<compile_context>
chip_gen: v5e
topology: v5e:2x2
jax: 0.10.0
libtpu: 0.0.40
codegen_flags: <defaults>
</compile_context>

<pallas_src>
import functools

import jax
import jax.numpy as jnp
from jax.experimental import pallas as pl
from jax.experimental.pallas import tpu as pltpu

C_PAD = 128          # lane width: all channel dims padded to this
N_TOWER = 4          # conv layers in each subnet tower
VMEM_LIMIT = 32 * 1024 * 1024


# ----------------------------------------------------------------------------
# In-kernel 3x3 "same" conv helper: reads a zero-padded (H+2, W+2, C) source,
# accumulates 9 shifted-window matmuls in f32 on the MXU, adds bias.
# ----------------------------------------------------------------------------
def _conv3x3_accum(src_ref, wfn, bias, H, W, C):
    xv = src_ref[...]                                   # (H+2, W+2, C) bf16
    acc = jnp.zeros((H * W, C), jnp.float32)
    for dy in range(3):
        for dx in range(3):
            patch = xv[dy:dy + H, dx:dx + W, :].reshape(H * W, C)
            acc = acc + jnp.dot(patch, wfn(dy * 3 + dx),
                                preferred_element_type=jnp.float32)
    return acc + bias                                   # bias: (1, C) f32


# ----------------------------------------------------------------------------
# Kernel 1: single 3x3 conv + bias + ReLU (synthetic backbone level).
# ----------------------------------------------------------------------------
def _conv3x3_relu_kernel(x_ref, w_ref, b_ref, o_ref, buf, *, H, W):
    # x_ref: (1, H, W, C) bf16   w_ref: (9, C, C) bf16   b_ref: (1, C) f32
    # o_ref: (1, H, W, C) bf16   buf:   (H+2, W+2, C) bf16 VMEM scratch
    C = x_ref.shape[-1]
    buf[...] = jnp.zeros_like(buf)                      # zero border (stays zero)
    buf[1:H + 1, 1:W + 1, :] = x_ref[0]                 # interior
    acc = _conv3x3_accum(buf, lambda k: w_ref[k], b_ref[...], H, W, C)
    acc = jnp.maximum(acc, 0.0)                         # f32 ReLU epilogue
    o_ref[0] = acc.reshape(H, W, C).astype(o_ref.dtype)


def conv3x3_relu(x, w, b):
    """x: (B,H,W,C_PAD) bf16; w: (9,C_PAD,C_PAD) bf16; b: (1,C_PAD) f32."""
    B, H, W, C = x.shape
    kernel = functools.partial(_conv3x3_relu_kernel, H=H, W=W)
    return pl.pallas_call(
        kernel,
        out_shape=jax.ShapeDtypeStruct((B, H, W, C), jnp.bfloat16),
        grid=(B,),
        in_specs=[
            pl.BlockSpec((1, H, W, C), lambda bi: (bi, 0, 0, 0)),
            pl.BlockSpec((9, C, C), lambda bi: (0, 0, 0)),
            pl.BlockSpec((1, C), lambda bi: (0, 0)),
        ],
        out_specs=pl.BlockSpec((1, H, W, C), lambda bi: (bi, 0, 0, 0)),
        scratch_shapes=[pltpu.VMEM((H + 2, W + 2, C), jnp.bfloat16)],
        compiler_params=pltpu.CompilerParams(
            dimension_semantics=("parallel",),
            vmem_limit_bytes=VMEM_LIMIT),
    )(x, w, b)


# ----------------------------------------------------------------------------
# Kernel 2: fused subnet = 4 x (3x3 conv + ReLU) tower + (3x3 conv + Sigmoid) head.
# Activations ping-pong between two VMEM scratch buffers; only the level input
# and the head output touch HBM.
# ----------------------------------------------------------------------------
def _subnet_tower_kernel(x_ref, wt_ref, bt_ref, wh_ref, bh_ref, o_ref,
                         buf0, buf1, *, H, W, n_tower):
    # x_ref:  (1, H, W, C) bf16           wt_ref: (n_tower*9, C, C) bf16
    # bt_ref: (n_tower, 1, C) f32         wh_ref: (9, C, C) bf16
    # bh_ref: (1, C) f32                  o_ref:  (1, H*W, C) f32  (lane-dense)
    # buf0/buf1: (H+2, W+2, C) bf16 VMEM scratch (ping-pong)
    C = x_ref.shape[-1]

    buf0[...] = jnp.zeros_like(buf0)                    # zero borders once;
    buf1[...] = jnp.zeros_like(buf1)                    # interiors overwritten
    buf0[1:H + 1, 1:W + 1, :] = x_ref[0]

    src, dst = buf0, buf1
    for li in range(n_tower):
        h = _conv3x3_accum(src, lambda k, li=li: wt_ref[li * 9 + k],
                           bt_ref[li], H, W, C)
        h = jnp.maximum(h, 0.0)                         # f32 ReLU
        dst[1:H + 1, 1:W + 1, :] = h.reshape(H, W, C).astype(dst.dtype)
        src, dst = dst, src

    y = _conv3x3_accum(src, lambda k: wh_ref[k], bh_ref[...], H, W, C)
    o_ref[0] = jax.nn.sigmoid(y)                        # (H*W, 128) f32, unmasked vst


def run_subnet(pyramid, tower_w, tower_b, head_w, head_b, *, last_dim, num_anchors):
    """Apply the fused subnet kernel to each pyramid level, flatten predictions
    to (B, H*W*A, last_dim) and concatenate over levels (matches the PyTorch
    view/permute/flatten: in NHWC, channel c = a*last_dim + i already orders (A, d))."""
    chead = num_anchors * last_dim
    outs = []
    for p in pyramid:                                   # p: (B, H, W, C_PAD) bf16
        B, H, W, C = p.shape
        kernel = functools.partial(_subnet_tower_kernel, H=H, W=W, n_tower=N_TOWER)
        flops = 2 * B * (N_TOWER + 1) * H * W * 9 * C * C
        bytes_accessed = (p.size * 2 + tower_w.size * 2 + head_w.size * 2
                          + tower_b.size * 4 + head_b.size * 4 + B * H * W * C * 4)
        y = pl.pallas_call(
            kernel,
            out_shape=jax.ShapeDtypeStruct((B, H * W, C), jnp.float32),
            grid=(B,),
            in_specs=[
                pl.BlockSpec((1, H, W, C), lambda bi: (bi, 0, 0, 0)),
                pl.BlockSpec((N_TOWER * 9, C, C), lambda bi: (0, 0, 0)),
                pl.BlockSpec((N_TOWER, 1, C), lambda bi: (0, 0, 0)),
                pl.BlockSpec((9, C, C), lambda bi: (0, 0, 0)),
                pl.BlockSpec((1, C), lambda bi: (0, 0)),
            ],
            out_specs=pl.BlockSpec((1, H * W, C), lambda bi: (bi, 0, 0)),
            scratch_shapes=[pltpu.VMEM((H + 2, W + 2, C), jnp.bfloat16),
                            pltpu.VMEM((H + 2, W + 2, C), jnp.bfloat16)],
            compiler_params=pltpu.CompilerParams(
                dimension_semantics=("parallel",),
                vmem_limit_bytes=VMEM_LIMIT),
            cost_estimate=pl.CostEstimate(
                flops=flops, transcendentals=B * H * W * C,
                bytes_accessed=bytes_accessed),
        )(p, tower_w, tower_b, head_w, head_b)
        # Drop zero-padded head channels, flatten to (B, H*W*A, last_dim).
        y = y[:, :, :chead].reshape(B, H * W * num_anchors, last_dim)
        outs.append(y)
    return jnp.concatenate(outs, axis=1)


# ----------------------------------------------------------------------------
# Parameter construction (synthetic; logical shapes match nn.Conv2d), padded to
# the 128-lane width and pre-cast to bf16 for the MXU.
# ----------------------------------------------------------------------------
def make_conv_params(key, cin, cout, scale=0.1):
    kw, kb = jax.random.split(key)
    w = scale * jax.random.normal(kw, (3, 3, cin, cout), jnp.float32)
    b = scale * jax.random.normal(kb, (cout,), jnp.float32)
    return w, b


def pad_conv_params(w, b, cpad=C_PAD):
    cin, cout = w.shape[2], w.shape[3]
    wp = jnp.zeros((3, 3, cpad, cpad), jnp.float32).at[:, :, :cin, :cout].set(w)
    wp = wp.reshape(9, cpad, cpad).astype(jnp.bfloat16)        # (9, C, C) bf16
    bp = jnp.zeros((1, cpad), jnp.float32).at[0, :cout].set(b)  # (1, C) f32
    return wp, bp


def make_subnet_params(key, in_channels, head_out):
    keys = jax.random.split(key, N_TOWER + 1)
    tw, tb = [], []
    for i in range(N_TOWER):
        wp, bp = pad_conv_params(*make_conv_params(keys[i], in_channels, in_channels))
        tw.append(wp)
        tb.append(bp)
    tower_w = jnp.concatenate(tw, axis=0)               # (N_TOWER*9, C, C) bf16
    tower_b = jnp.stack(tb)                             # (N_TOWER, 1, C)  f32
    head_w, head_b = pad_conv_params(*make_conv_params(keys[N_TOWER],
                                                       in_channels, head_out))
    return tower_w, tower_b, head_w, head_b


def pad_channels(x, cpad=C_PAD):
    return jnp.pad(x, ((0, 0), (0, 0), (0, 0), (0, cpad - x.shape[-1])))


# ----------------------------------------------------------------------------
# RetinaNet forward (pyramid -> subnets -> flattened predictions).
# ----------------------------------------------------------------------------
def simple_backbone(x_nhwc, bb_params):
    """Synthetic 2-level feature pyramid: level0 = conv(x)+ReLU,
    level1 = conv(avgpool2(x))+ReLU.  (The reference backbone is an external
    module; this stands in for it.)"""
    (w0, b0), (w1, b1) = bb_params
    B, H, W, _ = x_nhwc.shape
    p0 = conv3x3_relu(pad_channels(x_nhwc).astype(jnp.bfloat16), w0, b0)
    x_ds = x_nhwc.reshape(B, H // 2, 2, W // 2, 2, -1).mean(axis=(2, 4))
    p1 = conv3x3_relu(pad_channels(x_ds).astype(jnp.bfloat16), w1, b1)
    return [p0, p1]


def retinanet_forward(x_nchw, params):
    x = jnp.transpose(x_nchw, (0, 2, 3, 1))             # NCHW -> NHWC
    pyramid = simple_backbone(x, params["backbone"])
    all_cls = run_subnet(pyramid, *params["cls"],
                         last_dim=params["num_classes"],
                         num_anchors=params["num_anchors"])
    # Note: the reference BoxRegressionSubnet applies Sigmoid to the box head too.
    all_box = run_subnet(pyramid, *params["box"],
                         last_dim=4,
                         num_anchors=params["num_anchors"])
    return all_cls, all_box


# ----------------------------------------------------------------------------
if __name__ == "__main__":
    num_classes = 4
    num_anchors = 3
    in_channels = 32
    B, Cimg, Himg, Wimg = 2, 3, 16, 16

    root = jax.random.PRNGKey(0)
    k_x, k_bb0, k_bb1, k_cls, k_box = jax.random.split(root, 5)

    params = {
        "num_classes": num_classes,
        "num_anchors": num_anchors,
        "backbone": [
            pad_conv_params(*make_conv_params(k_bb0, Cimg, in_channels)),
            pad_conv_params(*make_conv_params(k_bb1, Cimg, in_channels)),
        ],
        "cls": make_subnet_params(k_cls, in_channels, num_classes * num_anchors),
        "box": make_subnet_params(k_box, in_channels, 4 * num_anchors),
    }

    x = jax.random.normal(k_x, (B, Cimg, Himg, Wimg), jnp.float32)

    all_cls, all_box = retinanet_forward(x, params)
    jax.block_until_ready((all_cls, all_box))

    # Expected anchors: (16*16 + 8*8) * num_anchors = 960
    n_anchor_locs = (Himg * Wimg + (Himg // 2) * (Wimg // 2)) * num_anchors
    assert all_cls.shape == (B, n_anchor_locs, num_classes), all_cls.shape
    assert all_box.shape == (B, n_anchor_locs, 4), all_box.shape
    assert bool(jnp.all(jnp.isfinite(all_cls))) and bool(jnp.all(jnp.isfinite(all_box)))
    print("KERNEL_OK")
</pallas_src>

<mosaic_0001>
module attributes {stable_mosaic.version = 11 : i64} {
  func.func @_conv3x3_relu_kernel(%arg0: i32, %arg1: memref<1x16x16x128xbf16, #tpu.memory_space<vmem>>, %arg2: memref<9x128x128xbf16, #tpu.memory_space<vmem>>, %arg3: memref<1x128xf32, #tpu.memory_space<vmem>>, %arg4: memref<1x16x16x128xbf16, #tpu.memory_space<vmem>>, %arg5: memref<18x18x128xbf16, #tpu.memory_space<vmem>>) attributes {dimension_semantics = [#tpu.dimension_semantics<parallel>], iteration_bounds = array<i64: 2>, scalar_prefetch = 0 : i64, scratch_operands = 1 : i64, tpu.core_type = #tpu.core_type<tc>, window_params = [{transform_indices = @transform_0, window_bounds = array<i64: 1, 16, 16, 128>}, {pipeline_mode = #tpu.pipeline_mode<synchronous>, transform_indices = @transform_1, window_bounds = array<i64: 9, 128, 128>}, {pipeline_mode = #tpu.pipeline_mode<synchronous>, transform_indices = @transform_2, window_bounds = array<i64: 1, 128>}, {transform_indices = @transform_3, window_bounds = array<i64: 1, 16, 16, 128>}]} {
    %cst = arith.constant 0.000000e+00 : bf16
    %0 = vector.broadcast %cst : bf16 to vector<18x18x128xbf16>
    %c0 = arith.constant 0 : index
    %c0_0 = arith.constant 0 : index
    %c0_1 = arith.constant 0 : index
    %1 = vector.load %arg5[%c0, %c0_0, %c0_1] : memref<18x18x128xbf16, #tpu.memory_space<vmem>>, vector<18x18x128xbf16>
    tpu.vector_store %arg5[%c0, %c0_0, %c0_1], %0 {strides = array<i32>} : memref<18x18x128xbf16, #tpu.memory_space<vmem>>, vector<18x18x128xbf16>,
    %c0_2 = arith.constant 0 : index
    %c0_3 = arith.constant 0 : index
    %c0_4 = arith.constant 0 : index
    %c0_5 = arith.constant 0 : index
    %2 = vector.load %arg1[%c0_2, %c0_3, %c0_4, %c0_5] : memref<1x16x16x128xbf16, #tpu.memory_space<vmem>>, vector<1x16x16x128xbf16>
    %3 = vector.shape_cast %2 : vector<1x16x16x128xbf16> to vector<16x16x128xbf16>
    %c1 = arith.constant 1 : index
    %c1_6 = arith.constant 1 : index
    %c0_7 = arith.constant 0 : index
    %4 = vector.load %arg5[%c1, %c1_6, %c0_7] : memref<18x18x128xbf16, #tpu.memory_space<vmem>>, vector<16x16x128xbf16>
    tpu.vector_store %arg5[%c1, %c1_6, %c0_7], %3 {strides = array<i32>} : memref<18x18x128xbf16, #tpu.memory_space<vmem>>, vector<16x16x128xbf16>,
    %c0_8 = arith.constant 0 : index
    %c0_9 = arith.constant 0 : index
    %5 = vector.load %arg3[%c0_8, %c0_9] : memref<1x128xf32, #tpu.memory_space<vmem>>, vector<1x128xf32>
    %c0_10 = arith.constant 0 : index
    %c0_11 = arith.constant 0 : index
    %c0_12 = arith.constant 0 : index
    %6 = vector.load %arg5[%c0_10, %c0_11, %c0_12] : memref<18x18x128xbf16, #tpu.memory_space<vmem>>, vector<18x18x128xbf16>
    %cst_13 = arith.constant 0.000000e+00 : f32
    %7 = vector.broadcast %cst_13 : f32 to vector<256x128xf32>
    %8 = vector.extract_strided_slice %6 {offsets = [0, 0, 0], sizes = [16, 16, 128], strides = [1, 1, 1]} : vector<18x18x128xbf16> to vector<16x16x128xbf16>
    %9 = vector.shape_cast %8 : vector<16x16x128xbf16> to vector<256x128xbf16>
    %c0_14 = arith.constant 0 : index
    %c0_15 = arith.constant 0 : index
    %c0_16 = arith.constant 0 : index
    %10 = vector.load %arg2[%c0_14, %c0_15, %c0_16] : memref<9x128x128xbf16, #tpu.memory_space<vmem>>, vector<1x128x128xbf16>
    %11 = vector.shape_cast %10 : vector<1x128x128xbf16> to vector<128x128xbf16>
    %cst_17 = arith.constant dense<0.000000e+00> : vector<256x128xf32>
    %12 = tpu.matmul %9, %11, %cst_17 {dimension_numbers = #tpu.dot_dimension_numbers<[1], [0], [0], [1], [0, 0, 1, 1], [], []>} : vector<256x128xbf16>, vector<128x128xbf16>, vector<256x128xf32> -> vector<256x128xf32>
    %13 = arith.addf %7, %12 : vector<256x128xf32>
    %14 = vector.extract_strided_slice %6 {offsets = [0, 1, 0], sizes = [16, 16, 128], strides = [1, 1, 1]} : vector<18x18x128xbf16> to vector<16x16x128xbf16>
    %15 = vector.shape_cast %14 : vector<16x16x128xbf16> to vector<256x128xbf16>
    %c1_18 = arith.constant 1 : index
    %c0_19 = arith.constant 0 : index
    %c0_20 = arith.constant 0 : index
    %16 = vector.load %arg2[%c1_18, %c0_19, %c0_20] : memref<9x128x128xbf16, #tpu.memory_space<vmem>>, vector<1x128x128xbf16>
    %17 = vector.shape_cast %16 : vector<1x128x128xbf16> to vector<128x128xbf16>
    %cst_21 = arith.constant dense<0.000000e+00> : vector<256x128xf32>
    %18 = tpu.matmul %15, %17, %cst_21 {dimension_numbers = #tpu.dot_dimension_numbers<[1], [0], [0], [1], [0, 0, 1, 1], [], []>} : vector<256x128xbf16>, vector<128x128xbf16>, vector<256x128xf32> -> vector<256x128xf32>
    %19 = arith.addf %13, %18 : vector<256x128xf32>
    %20 = vector.extract_strided_slice %6 {offsets = [0, 2, 0], sizes = [16, 16, 128], strides = [1, 1, 1]} : vector<18x18x128xbf16> to vector<16x16x128xbf16>
    %21 = vector.shape_cast %20 : vector<16x16x128xbf16> to vector<256x128xbf16>
    %c2 = arith.constant 2 : index
    %c0_22 = arith.constant 0 : index
    %c0_23 = arith.constant 0 : index
    %22 = vector.load %arg2[%c2, %c0_22, %c0_23] : memref<9x128x128xbf16, #tpu.memory_space<vmem>>, vector<1x128x128xbf16>
    %23 = vector.shape_cast %22 : vector<1x128x128xbf16> to vector<128x128xbf16>
    %cst_24 = arith.constant dense<0.000000e+00> : vector<256x128xf32>
    %24 = tpu.matmul %21, %23, %cst_24 {dimension_numbers = #tpu.dot_dimension_numbers<[1], [0], [0], [1], [0, 0, 1, 1], [], []>} : vector<256x128xbf16>, vector<128x128xbf16>, vector<256x128xf32> -> vector<256x128xf32>
    %25 = arith.addf %19, %24 : vector<256x128xf32>
    %26 = vector.extract_strided_slice %6 {offsets = [1, 0, 0], sizes = [16, 16, 128], strides = [1, 1, 1]} : vector<18x18x128xbf16> to vector<16x16x128xbf16>
    %27 = vector.shape_cast %26 : vector<16x16x128xbf16> to vector<256x128xbf16>
    %c3 = arith.constant 3 : index
    %c0_25 = arith.constant 0 : index
    %c0_26 = arith.constant 0 : index
    %28 = vector.load %arg2[%c3, %c0_25, %c0_26] : memref<9x128x128xbf16, #tpu.memory_space<vmem>>, vector<1x128x128xbf16>
    %29 = vector.shape_cast %28 : vector<1x128x128xbf16> to vector<128x128xbf16>
    %cst_27 = arith.constant dense<0.000000e+00> : vector<256x128xf32>
    %30 = tpu.matmul %27, %29, %cst_27 {dimension_numbers = #tpu.dot_dimension_numbers<[1], [0], [0], [1], [0, 0, 1, 1], [], []>} : vector<256x128xbf16>, vector<128x128xbf16>, vector<256x128xf32> -> vector<256x128xf32>
    %31 = arith.addf %25, %30 : vector<256x128xf32>
    %32 = vector.extract_strided_slice %6 {offsets = [1, 1, 0], sizes = [16, 16, 128], strides = [1, 1, 1]} : vector<18x18x128xbf16> to vector<16x16x128xbf16>
    %33 = vector.shape_cast %32 : vector<16x16x128xbf16> to vector<256x128xbf16>
    %c4 = arith.constant 4 : index
    %c0_28 = arith.constant 0 : index
    %c0_29 = arith.constant 0 : index
    %34 = vector.load %arg2[%c4, %c0_28, %c0_29] : memref<9x128x128xbf16, #tpu.memory_space<vmem>>, vector<1x128x128xbf16>
    %35 = vector.shape_cast %34 : vector<1x128x128xbf16> to vector<128x128xbf16>
    %cst_30 = arith.constant dense<0.000000e+00> : vector<256x128xf32>
    %36 = tpu.matmul %33, %35, %cst_30 {dimension_numbers = #tpu.dot_dimension_numbers<[1], [0], [0], [1], [0, 0, 1, 1], [], []>} : vector<256x128xbf16>, vector<128x128xbf16>, vector<256x128xf32> -> vector<256x128xf32>
    %37 = arith.addf %31, %36 : vector<256x128xf32>
    %38 = vector.extract_strided_slice %6 {offsets = [1, 2, 0], sizes = [16, 16, 128], strides = [1, 1, 1]} : vector<18x18x128xbf16> to vector<16x16x128xbf16>
    %39 = vector.shape_cast %38 : vector<16x16x128xbf16> to vector<256x128xbf16>
    %c5 = arith.constant 5 : index
    %c0_31 = arith.constant 0 : index
    %c0_32 = arith.constant 0 : index
    %40 = vector.load %arg2[%c5, %c0_31, %c0_32] : memref<9x128x128xbf16, #tpu.memory_space<vmem>>, vector<1x128x128xbf16>
    %41 = vector.shape_cast %40 : vector<1x128x128xbf16> to vector<128x128xbf16>
    %cst_33 = arith.constant dense<0.000000e+00> : vector<256x128xf32>
    %42 = tpu.matmul %39, %41, %cst_33 {dimension_numbers = #tpu.dot_dimension_numbers<[1], [0], [0], [1], [0, 0, 1, 1], [], []>} : vector<256x128xbf16>, vector<128x128xbf16>, vector<256x128xf32> -> vector<256x128xf32>
    %43 = arith.addf %37, %42 : vector<256x128xf32>
    %44 = vector.extract_strided_slice %6 {offsets = [2, 0, 0], sizes = [16, 16, 128], strides = [1, 1, 1]} : vector<18x18x128xbf16> to vector<16x16x128xbf16>
    %45 = vector.shape_cast %44 : vector<16x16x128xbf16> to vector<256x128xbf16>
    %c6 = arith.constant 6 : index
    %c0_34 = arith.constant 0 : index
    %c0_35 = arith.constant 0 : index
    %46 = vector.load %arg2[%c6, %c0_34, %c0_35] : memref<9x128x128xbf16, #tpu.memory_space<vmem>>, vector<1x128x128xbf16>
    %47 = vector.shape_cast %46 : vector<1x128x128xbf16> to vector<128x128xbf16>
    %cst_36 = arith.constant dense<0.000000e+00> : vector<256x128xf32>
    %48 = tpu.matmul %45, %47, %cst_36 {dimension_numbers = #tpu.dot_dimension_numbers<[1], [0], [0], [1], [0, 0, 1, 1], [], []>} : vector<256x128xbf16>, vector<128x128xbf16>, vector<256x128xf32> -> vector<256x128xf32>
    %49 = arith.addf %43, %48 : vector<256x128xf32>
    %50 = vector.extract_strided_slice %6 {offsets = [2, 1, 0], sizes = [16, 16, 128], strides = [1, 1, 1]} : vector<18x18x128xbf16> to vector<16x16x128xbf16>
    %51 = vector.shape_cast %50 : vector<16x16x128xbf16> to vector<256x128xbf16>
    %c7 = arith.constant 7 : index
    %c0_37 = arith.constant 0 : index
    %c0_38 = arith.constant 0 : index
    %52 = vector.load %arg2[%c7, %c0_37, %c0_38] : memref<9x128x128xbf16, #tpu.memory_space<vmem>>, vector<1x128x128xbf16>
    %53 = vector.shape_cast %52 : vector<1x128x128xbf16> to vector<128x128xbf16>
    %cst_39 = arith.constant dense<0.000000e+00> : vector<256x128xf32>
    %54 = tpu.matmul %51, %53, %cst_39 {dimension_numbers = #tpu.dot_dimension_numbers<[1], [0], [0], [1], [0, 0, 1, 1], [], []>} : vector<256x128xbf16>, vector<128x128xbf16>, vector<256x128xf32> -> vector<256x128xf32>
    %55 = arith.addf %49, %54 : vector<256x128xf32>
    %56 = vector.extract_strided_slice %6 {offsets = [2, 2, 0], sizes = [16, 16, 128], strides = [1, 1, 1]} : vector<18x18x128xbf16> to vector<16x16x128xbf16>
    %57 = vector.shape_cast %56 : vector<16x16x128xbf16> to vector<256x128xbf16>
    %c8 = arith.constant 8 : index
    %c0_40 = arith.constant 0 : index
    %c0_41 = arith.constant 0 : index
    %58 = vector.load %arg2[%c8, %c0_40, %c0_41] : memref<9x128x128xbf16, #tpu.memory_space<vmem>>, vector<1x128x128xbf16>
    %59 = vector.shape_cast %58 : vector<1x128x128xbf16> to vector<128x128xbf16>
    %cst_42 = arith.constant dense<0.000000e+00> : vector<256x128xf32>
    %60 = tpu.matmul %57, %59, %cst_42 {dimension_numbers = #tpu.dot_dimension_numbers<[1], [0], [0], [1], [0, 0, 1, 1], [], []>} : vector<256x128xbf16>, vector<128x128xbf16>, vector<256x128xf32> -> vector<256x128xf32>
    %61 = arith.addf %55, %60 : vector<256x128xf32>
    %62 = vector.broadcast %5 : vector<1x128xf32> to vector<256x128xf32>
    %63 = arith.addf %61, %62 : vector<256x128xf32>
    %cst_43 = arith.constant 0.000000e+00 : f32
    %64 = vector.broadcast %cst_43 : f32 to vector<256x128xf32>
    %65 = arith.maximumf %63, %64 : vector<256x128xf32>
    %66 = vector.shape_cast %65 : vector<256x128xf32> to vector<16x16x128xf32>
    %67 = arith.truncf %66 : vector<16x16x128xf32> to vector<16x16x128xbf16>
    %c0_44 = arith.constant 0 : index
    %c0_45 = arith.constant 0 : index
    %c0_46 = arith.constant 0 : index
    %c0_47 = arith.constant 0 : index
    %68 = vector.load %arg4[%c0_44, %c0_45, %c0_46, %c0_47] : memref<1x16x16x128xbf16, #tpu.memory_space<vmem>>, vector<1x16x16x128xbf16>
    %69 = vector.shape_cast %68 : vector<1x16x16x128xbf16> to vector<16x16x128xbf16>
    %70 = vector.shape_cast %67 : vector<16x16x128xbf16> to vector<1x16x16x128xbf16>
    tpu.vector_store %arg4[%c0_44, %c0_45, %c0_46, %c0_47], %70 {strides = array<i32>} : memref<1x16x16x128xbf16, #tpu.memory_space<vmem>>, vector<1x16x16x128xbf16>,
    return
  }
  func.func @transform_0(%arg0: i32) -> (i32, i32, i32, i32) {
    %c0_i32 = arith.constant 0 : i32
    %c0_i32_0 = arith.constant 0 : i32
    %c0_i32_1 = arith.constant 0 : i32
    %c0_i32_2 = arith.constant 0 : i32
    return %arg0, %c0_i32, %c0_i32_0, %c0_i32_1 : i32, i32, i32, i32
  }
  func.func @transform_1(%arg0: i32) -> (i32, i32, i32) {
    %c0_i32 = arith.constant 0 : i32
    %c0_i32_0 = arith.constant 0 : i32
    %c0_i32_1 = arith.constant 0 : i32
    %c0_i32_2 = arith.constant 0 : i32
    return %c0_i32, %c0_i32_0, %c0_i32_1 : i32, i32, i32
  }
  func.func @transform_2(%arg0: i32) -> (i32, i32) {
    %c0_i32 = arith.constant 0 : i32
    %c0_i32_0 = arith.constant 0 : i32
    %c0_i32_1 = arith.constant 0 : i32
    return %c0_i32, %c0_i32_0 : i32, i32
  }
  func.func @transform_3(%arg0: i32) -> (i32, i32, i32, i32) {
    %c0_i32 = arith.constant 0 : i32
    %c0_i32_0 = arith.constant 0 : i32
    %c0_i32_1 = arith.constant 0 : i32
    %c0_i32_2 = arith.constant 0 : i32
    return %arg0, %c0_i32, %c0_i32_0, %c0_i32_1 : i32, i32, i32, i32
  }
}

</mosaic_0001>

<llo_original>
// kernel: tpu_custom_call.1
$region0: #{tpu_custom_call.1}
  #allocation0 [shape = 'u32[]', space=smem, size = 0x4, offset = 0x4, fixed_abs, tag = 'smem constant byte address 0x4 - core index']
  #allocation1 [shape = 'u32[72,128]{1,0:T(1,128)}', space=vmem, size = 0x9000, scoped, tag = 'internal scratch']
  #allocation2 [shape = 'bf16[18,18,128]{2,1,0:T(8,128)(2,1)}', space=vmem, size = 0x1b000, scoped, tag = 'scratch operand']
  %s0 = inlined_call_operand.hbm [shape: bf16[2,16,16,128], index: 0, kind: input, shape index: {}]
  %s1 = inlined_call_operand.hbm [shape: bf16[9,128,128], index: 1, kind: input, shape index: {}]
  %s2 = inlined_call_operand.vmem [shape: f32[1,128], index: 2, kind: input, shape index: {}]
  %s3 = inlined_call_operand.hbm [shape: bf16[2,16,16,128], index: 3, kind: output, shape index: {}]
  %s4 = sld [smem:[#allocation0]]
  $region53: #{tpu_custom_call.1} parent=0
    _
  %s6 = ssub.s32 1, %s4
  %s7 = scalar_select 0, %s6, %s4
  $region1: #{tpu_custom_call.1} parent=0
    #allocation3 [shape = 'u8[131072]{0}', space=vmem, size = 0x20000, scoped, tag = 'input window, operand 0']
    #allocation4 [shape = 's32[2]{0}', space=sflag, size = 0x8, scoped, tag = 'scoped memory for tpu_custom_call.1']
    #allocation5 [shape = 's32[2]{0}', space=sflag, size = 0x8, scoped, tag = 'scoped memory for tpu_custom_call.1']
    #allocation6 [shape = 'u8[294912]{0}', space=vmem, size = 0x48000, scoped, tag = 'input window, operand 1, single buffered']
    #allocation7 [shape = 's32[1]{0}', space=sflag, size = 0x4, scoped, tag = 'scoped memory for tpu_custom_call.1']
    #allocation8 [shape = 'u8[131072]{0}', space=vmem, size = 0x20000, scoped, tag = 'output window, operand 0']
    %8 = vsyncpa [#allocation4], 0
    %s9 = scalar_lea.sflag [#allocation4], 1
    %10 = vsyncpa %s9, 0
    %11 = vsyncpa [#allocation7], 0
    %12 = vsyncpa [#allocation5], 0
    %s13 = scalar_lea.sflag [#allocation5], 1
    %14 = vsyncpa %s13, 0
    loop: start=0, step=1, limit=4
    $region2: #{tpu_custom_call.1} parent=1 // loop_pre_header
      _
    $region3: #{tpu_custom_call.1} parent=1 // loop_header
      %s16 = sphi 0, %s20
      %p17 = scmp.ge.s32.totalorder %s16, 4
      %s26 = sphi 0, %s28
      %s29 = sphi 0, %s26
      %s30 = sphi 0, %s29
      %s46 = sphi 0, %s30
      %s50 = sphi 0, %s50
      %s52 = sphi 0, %s50
      %s53 = sphi 0, %s52
      %s67 = sphi 0, %s53
      %s71 = sphi 0, %s71
      %s73 = sphi 0, %s71
      %s74 = sphi 0, %s73
      %s88 = sphi 0, %s74
      %s94 = sphi 0, %s96
      %s97 = sphi 0, %s94
      %s98 = sphi 0, %s97
      %s114 = sphi 0, %s98
    $region4: #{tpu_custom_call.1} parent=1 // loop_header_branch
      %19 = sbr.rel (%p17) target = $region8
    $region5: #{tpu_custom_call.1} parent=1 // loop_body
      %s21 = ssub.s32 %s16, 1
      %s22 = ssub.s32 %s16, 2
      %s23 = sadd.s32 %s16, 1
      %s24 = ssub.s32 %s16, %s23
      %p25 = scmp.eq.s32.totalorder %s24, 0
      %s27 = sadd.s32 %s26, 1
      %s28 = scalar_select %p25, %s26, %s27
      %p31 = pneg %p25
      %p32 = scmp.eq.s32.totalorder %s16, 1
      %p33 = por %p31, %p32
      %p34 = scmp.ne.s32.totalorder %s26, %s29
      %p35 = scmp.eq.s32.totalorder %s16, 0
      %p36 = por %p34, %p35
      %p37 = scmp.ne.s32.totalorder %s26, %s29
      %p38 = scmp.eq.s32.totalorder %s21, 1
      %p39 = por %p37, %p38
      %p40 = scmp.ne.s32.totalorder %s29, %s30
      %p41 = scmp.eq.s32.totalorder %s21, 0
      %p42 = por %p40, %p41
      %p43 = scmp.ne.s32.totalorder %s29, %s30
      %p44 = scmp.eq.s32.totalorder %s22, 1
      %p45 = por %p43, %p44
      %p47 = scmp.ne.s32.totalorder %s30, %s46
      %p48 = scmp.eq.s32.totalorder %s22, 0
      %p49 = por %p47, %p48
      %s51 = sadd.s32 %s50, 1
      %p54 = scmp.eq.s32.totalorder %s16, 1
      %p55 = scmp.ne.s32.totalorder %s50, %s52
      %p56 = scmp.eq.s32.totalorder %s16, 0
      %p57 = por %p55, %p56
      %p58 = scmp.ne.s32.totalorder %s50, %s52
      %p59 = scmp.eq.s32.totalorder %s21, 1
      %p60 = por %p58, %p59
      %p61 = scmp.ne.s32.totalorder %s52, %s53
      %p62 = scmp.eq.s32.totalorder %s21, 0
      %p63 = por %p61, %p62
      %p64 = scmp.ne.s32.totalorder %s52, %s53
      %p65 = scmp.eq.s32.totalorder %s22, 1
      %p66 = por %p64, %p65
      %p68 = scmp.ne.s32.totalorder %s53, %s67
      %p69 = scmp.eq.s32.totalorder %s22, 0
      %p70 = por %p68, %p69
      %s72 = sadd.s32 %s71, 1
      %p75 = scmp.eq.s32.totalorder %s16, 1
      %p76 = scmp.ne.s32.totalorder %s71, %s73
      %p77 = scmp.eq.s32.totalorder %s16, 0
      %p78 = por %p76, %p77
      %p79 = scmp.ne.s32.totalorder %s71, %s73
      %p80 = scmp.eq.s32.totalorder %s21, 1
      %p81 = por %p79, %p80
      %p82 = scmp.ne.s32.totalorder %s73, %s74
      %p83 = scmp.eq.s32.totalorder %s21, 0
      %p84 = por %p82, %p83
      %p85 = scmp.ne.s32.totalorder %s73, %s74
      %p86 = scmp.eq.s32.totalorder %s22, 1
      %p87 = por %p85, %p86
      %p89 = scmp.ne.s32.totalorder %s74, %s88
      %p90 = scmp.eq.s32.totalorder %s22, 0
      %p91 = por %p89, %p90
      %s92 = ssub.s32 %s16, %s23
      %p93 = scmp.eq.s32.totalorder %s92, 0
      %s95 = sadd.s32 %s94, 1
      %s96 = scalar_select %p93, %s94, %s95
      %p99 = pneg %p93
      %p100 = scmp.eq.s32.totalorder %s16, 1
      %p101 = por %p99, %p100
      %p102 = scmp.ne.s32.totalorder %s94, %s97
      %p103 = scmp.eq.s32.totalorder %s16, 0
      %p104 = por %p102, %p103
      %p105 = scmp.ne.s32.totalorder %s94, %s97
      %p106 = scmp.eq.s32.totalorder %s21, 1
      %p107 = por %p105, %p106
      %p108 = scmp.ne.s32.totalorder %s97, %s98
      %p109 = scmp.eq.s32.totalorder %s21, 0
      %p110 = por %p108, %p109
      %p111 = scmp.ne.s32.totalorder %s97, %s98
      %p112 = scmp.eq.s32.totalorder %s22, 1
      %p113 = por %p111, %p112
      %p115 = scmp.ne.s32.totalorder %s98, %s114
      %p116 = scmp.eq.s32.totalorder %s22, 0
      %p117 = por %p115, %p116
      %p118 = scmp.le.s32.totalorder 1, %s16
      %p119 = scmp.lt.s32.totalorder %s16, 3
      %p120 = pnand %p118, %p119
      %p121 = pneg %p120
      // Predicated region
      $region9: #{tpu_custom_call.1} parent=5 // pred_check
        _
      $region10: #{tpu_custom_call.1} parent=5 // pred_check_branch
        %123 = sbr.rel (%p120) target = $region12
      $region11: #{tpu_custom_call.1} parent=5 // pred_region
        %s124 = ssub.s32 %s16, 1
        // Predicated region
        $region13: #{tpu_custom_call.1} parent=11 // pred_check
          %p125 = pneg %p63
        $region14: #{tpu_custom_call.1} parent=11 // pred_check_branch
          %127 = sbr.rel (%p125) target = $region16
        $region15: #{tpu_custom_call.1} parent=11 // pred_region
          %129 = vsyncadd [#allocation7], 0
          %s130 = sshll.u32 %s1, 4
          %s131 = int_to_ptr.hbm [resolvable:$true] %s130
          %s132 = sshll.u32 [#allocation6], 4
          %s133 = int_to_ptr.vmem [resolvable:$true] %s132
          %138 = dma.hbm_to_vmem [thread:$0]  %s131, 9216, %s133, [#allocation7], 64, 64, 4
        $region16: #{tpu_custom_call.1} parent=11 // pred_fallthru
          _
        // Predicated region
        $region17: #{tpu_custom_call.1} parent=11 // pred_check
          %p139 = pneg %p84
        $region18: #{tpu_custom_call.1} parent=11 // pred_check_branch
          %141 = sbr.rel (%p139) target = $region20
        $region19: #{tpu_custom_call.1} parent=11 // pred_region
          _
        $region20: #{tpu_custom_call.1} parent=11 // pred_fallthru
          _
      $region12: #{tpu_custom_call.1} parent=5 // pred_fallthru
        _
      %p142 = scmp.lt.s32.totalorder %s16, 2
      // Predicated region
      $region21: #{tpu_custom_call.1} parent=5 // pred_check
        %p143 = pneg %p142
      $region22: #{tpu_custom_call.1} parent=5 // pred_check_branch
        %145 = sbr.rel (%p143) target = $region24
      $region23: #{tpu_custom_call.1} parent=5 // pred_region
        // Predicated region
        $region25: #{tpu_custom_call.1} parent=23 // pred_check
          %p146 = pneg %p36
        $region26: #{tpu_custom_call.1} parent=23 // pred_check_branch
          %148 = sbr.rel (%p146) target = $region28
        $region27: #{tpu_custom_call.1} parent=23 // pred_region
          %s149 = sand.u32 %s26, 1
          %s150 = scalar_lea.sflag [#allocation4], %s149
          %s151 = sand.u32 %s26, 1
          %s152 = smul.addr %s151, 128
          %s153 = scalar_lea.vmem [#allocation3], %s152
          %155 = vsyncadd %s150, 0
          %s156 = smul.addr %s16, 32
          %s157 = smul.addr %s156, 4
          %s158 = scalar_lea.hbm %s0, %s157
          %s159 = sshll.u32 %s158, 4
          %s160 = int_to_ptr.hbm [resolvable:$true] %s159
          %s161 = sshll.u32 %s153, 4
          %s162 = int_to_ptr.vmem [resolvable:$true] %s161
          %167 = dma.hbm_to_vmem [thread:$0]  %s160, 2048, %s162, %s150, 64, 64, 4
        $region28: #{tpu_custom_call.1} parent=23 // pred_fallthru
          _
      $region24: #{tpu_custom_call.1} parent=5 // pred_fallthru
        _
      %p168 = scmp.le.s32.totalorder 1, %s16
      %p169 = scmp.lt.s32.totalorder %s16, 3
      %p170 = pnand %p168, %p169
      %p171 = pneg %p170
      // Predicated region
      $region29: #{tpu_custom_call.1} parent=5 // pred_check
        _
      $region30: #{tpu_custom_call.1} parent=5 // pred_check_branch
        %173 = sbr.rel (%p170) target = $region32
      $region31: #{tpu_custom_call.1} parent=5 // pred_region
        %s174 = ssub.s32 %s16, 1
        %s175 = sand.u32 %s29, 1
        %s176 = scalar_lea.sflag [#allocation4], %s175
        %s177 = sand.u32 %s29, 1
        %s178 = smul.addr %s177, 128
        %s179 = scalar_lea.vmem [#allocation3], %s178
        // Predicated region
        $region33: #{tpu_custom_call.1} parent=31 // pred_check
          %p180 = pneg %p42
        $region34: #{tpu_custom_call.1} parent=31 // pred_check_branch
          %182 = sbr.rel (%p180) target = $region36
        $region35: #{tpu_custom_call.1} parent=31 // pred_region
          %184 = dma.done %s176, 2048
        $region36: #{tpu_custom_call.1} parent=31 // pred_fallthru
          _
        // Predicated region
        $region37: #{tpu_custom_call.1} parent=31 // pred_check
          %p185 = pneg %p63
        $region38: #{tpu_custom_call.1} parent=31 // pred_check_branch
          %187 = sbr.rel (%p185) target = $region40
        $region39: #{tpu_custom_call.1} parent=31 // pred_region
          %189 = dma.done [#allocation7], 9216
        $region40: #{tpu_custom_call.1} parent=31 // pred_fallthru
          _
        %s190 = sand.u32 %s29, 1
        %s191 = scalar_lea.sflag [#allocation4], %s190
        %s192 = sand.u32 %s29, 1
        %s193 = smul.addr %s192, 128
        %s194 = scalar_lea.vmem [#allocation3], %s193
        %p195 = pneg %p42
        %p196 = pneg %p39
        %p197 = pneg %p63
        %p198 = pneg %p60
        %p199 = pneg %p84
        %p200 = pneg %p81
        %p201 = pneg %p110
        %p202 = pneg %p107
        %s203 = sand.u32 %s97, 1
        %s204 = scalar_lea.sflag [#allocation5], %s203
        %s205 = sand.u32 %s97, 1
        %s206 = smul.addr %s205, 128
        %s207 = scalar_lea.vmem [#allocation8], %s206
        %209 = vst [vmem:[#allocation2] sm:$0xf] 0
        %210 = vst [vmem:[#allocation2 + $0x4] sm:$0xf] 0
        %211 = vst [vmem:[#allocation2 + $0x8] sm:$0x1] 0
        %212 = vst [vmem:[#allocation2 + $0xc] sm:$0xf] 0
        %213 = vst [vmem:[#allocation2 + $0x10] sm:$0xf] 0
        %214 = vst [vmem:[#allocation2 + $0x14] sm:$0x1] 0
        %215 = vst [vmem:[#allocation2 + $0x18] sm:$0xf] 0
        %216 = vst [vmem:[#allocation2 + $0x1c] sm:$0xf] 0
        %217 = vst [vmem:[#allocation2 + $0x20] sm:$0x1] 0
        %218 = vst [vmem:[#allocation2 + $0x24] sm:$0xf] 0
        %219 = vst [vmem:[#allocation2 + $0x28] sm:$0xf] 0
        %220 = vst [vmem:[#allocation2 + $0x2c] sm:$0x1] 0
        %221 = vst [vmem:[#allocation2 + $0x30] sm:$0xf] 0
        %222 = vst [vmem:[#allocation2 + $0x34] sm:$0xf] 0
        %223 = vst [vmem:[#allocation2 + $0x38] sm:$0x1] 0
        %224 = vst [vmem:[#allocation2 + $0x3c] sm:$0xf] 0
        %225 = vst [vmem:[#allocation2 + $0x40] sm:$0xf] 0
        %226 = vst [vmem:[#allocation2 + $0x44] sm:$0x1] 0
        %227 = vst [vmem:[#allocation2 + $0x48] sm:$0xf] 0
        %228 = vst [vmem:[#allocation2 + $0x4c] sm:$0xf] 0
        %229 = vst [vmem:[#allocation2 + $0x50] sm:$0x1] 0
        %230 = vst [vmem:[#allocation2 + $0x54] sm:$0xf] 0
        %231 = vst [vmem:[#allocation2 + $0x58] sm:$0xf] 0
        %232 = vst [vmem:[#allocation2 + $0x5c] sm:$0x1] 0
        %233 = vst [vmem:[#allocation2 + $0x60] sm:$0xf] 0
        %234 = vst [vmem:[#allocation2 + $0x64] sm:$0xf] 0
        %235 = vst [vmem:[#allocation2 + $0x68] sm:$0x1] 0
        %236 = vst [vmem:[#allocation2 + $0x6c] sm:$0xf] 0
        %237 = vst [vmem:[#allocation2 + $0x70] sm:$0xf] 0
        %238 = vst [vmem:[#allocation2 + $0x74] sm:$0x1] 0
        %239 = vst [vmem:[#allocation2 + $0x78] sm:$0xf] 0
        %240 = vst [vmem:[#allocation2 + $0x7c] sm:$0xf] 0
        %241 = vst [vmem:[#allocation2 + $0x80] sm:$0x1] 0
        %242 = vst [vmem:[#allocation2 + $0x84] sm:$0xf] 0
        %243 = vst [vmem:[#allocation2 + $0x88] sm:$0xf] 0
        %244 = vst [vmem:[#allocation2 + $0x8c] sm:$0x1] 0
        %245 = vst [vmem:[#allocation2 + $0x90] sm:$0xf] 0
        %246 = vst [vmem:[#allocation2 + $0x94] sm:$0xf] 0
        %247 = vst [vmem:[#allocation2 + $0x98] sm:$0x1] 0
        %248 = vst [vmem:[#allocation2 + $0x9c] sm:$0xf] 0
        %249 = vst [vmem:[#allocation2 + $0xa0] sm:$0xf] 0
        %250 = vst [vmem:[#allocation2 + $0xa4] sm:$0x1] 0
        %251 = vst [vmem:[#allocation2 + $0xa8] sm:$0xf] 0
        %252 = vst [vmem:[#allocation2 + $0xac] sm:$0xf] 0
        %253 = vst [vmem:[#allocation2 + $0xb0] sm:$0x1] 0
        %254 = vst [vmem:[#allocation2 + $0xb4] sm:$0xf] 0
        %255 = vst [vmem:[#allocation2 + $0xb8] sm:$0xf] 0
        %256 = vst [vmem:[#allocation2 + $0xbc] sm:$0x1] 0
        %257 = vst [vmem:[#allocation2 + $0xc0] sm:$0xf] 0
        %258 = vst [vmem:[#allocation2 + $0xc4] sm:$0xf] 0
        %259 = vst [vmem:[#allocation2 + $0xc8] sm:$0x1] 0
        %260 = vst [vmem:[#allocation2 + $0xcc] sm:$0xf] 0
        %261 = vst [vmem:[#allocation2 + $0xd0] sm:$0xf] 0
        %262 = vst [vmem:[#allocation2 + $0xd4] sm:$0x1] 0
        %v263 = vld [vmem:[%s179] sm:$0xf]
        %v264 = vld [vmem:[%s179 + $0x4] sm:$0xf]
        %v265 = vld [vmem:[%s179 + $0x8] sm:$0xf]
        %v266 = vld [vmem:[%s179 + $0xc] sm:$0xf]
        %v267 = vld [vmem:[%s179 + $0x10] sm:$0xf]
        %v268 = vld [vmem:[%s179 + $0x14] sm:$0xf]
        %v269 = vld [vmem:[%s179 + $0x18] sm:$0xf]
        %v270 = vld [vmem:[%s179 + $0x1c] sm:$0xf]
        %v271 = vld [vmem:[%s179 + $0x20] sm:$0xf]
        %v272 = vld [vmem:[%s179 + $0x24] sm:$0xf]
        %v273 = vld [vmem:[%s179 + $0x28] sm:$0xf]
        %v274 = vld [vmem:[%s179 + $0x2c] sm:$0xf]
        %v275 = vld [vmem:[%s179 + $0x30] sm:$0xf]
        %v276 = vld [vmem:[%s179 + $0x34] sm:$0xf]
        %v277 = vld [vmem:[%s179 + $0x38] sm:$0xf]
        %v278 = vld [vmem:[%s179 + $0x3c] sm:$0xf]
        %v279 = vld [vmem:[%s179 + $0x40] sm:$0xf]
        %v280 = vld [vmem:[%s179 + $0x44] sm:$0xf]
        %v281 = vld [vmem:[%s179 + $0x48] sm:$0xf]
        %v282 = vld [vmem:[%s179 + $0x4c] sm:$0xf]
        %v283 = vld [vmem:[%s179 + $0x50] sm:$0xf]
        %v284 = vld [vmem:[%s179 + $0x54] sm:$0xf]
        %v285 = vld [vmem:[%s179 + $0x58] sm:$0xf]
        %v286 = vld [vmem:[%s179 + $0x5c] sm:$0xf]
        %v287 = vld [vmem:[%s179 + $0x60] sm:$0xf]
        %v288 = vld [vmem:[%s179 + $0x64] sm:$0xf]
        %v289 = vld [vmem:[%s179 + $0x68] sm:$0xf]
        %v290 = vld [vmem:[%s179 + $0x6c] sm:$0xf]
        %v291 = vld [vmem:[%s179 + $0x70] sm:$0xf]
        %v292 = vld [vmem:[%s179 + $0x74] sm:$0xf]
        %v293 = vld [vmem:[%s179 + $0x78] sm:$0xf]
        %v294 = vld [vmem:[%s179 + $0x7c] sm:$0xf]
        %vm295 = vsmask.f32 256
        %vm296 = vsmask.f32 4368
        %vm297 = vmor %vm295, %vm296
        %v299 = vshrl.u32 %v263, 16
        %v301 = vrot.slane %v299, 7
        %v302 = vshll.u32 %v263, 16
        %v304 = vor.u32 %v301, %v302
        %v305 = vrot.slane %v301, 4
        %v307 = vshrl.u32 %v264, 16
        %v309 = vrot.slane %v307, 7
        %v310 = vshll.u32 %v264, 16
        %v312 = vor.u32 %v309, %v310
        %v313 = vsel %vm297, %v305, %v312
        %v314 = vrot.slane %v309, 4
        %v316 = vshrl.u32 %v265, 16
        %v318 = vrot.slane %v316, 7
        %v319 = vshll.u32 %v265, 16
        %v321 = vor.u32 %v318, %v319
        %v322 = vrot.slane %v318, 4
        %v324 = vshrl.u32 %v266, 16
        %v326 = vrot.slane %v324, 7
        %v327 = vshll.u32 %v266, 16
        %v329 = vor.u32 %v326, %v327
        %v330 = vsel %vm297, %v322, %v329
        %v331 = vrot.slane %v326, 4
        %v333 = vshrl.u32 %v267, 16
        %v335 = vrot.slane %v333, 7
        %v336 = vshll.u32 %v267, 16
        %v338 = vor.u32 %v335, %v336
        %v339 = vrot.slane %v335, 4
        %v341 = vshrl.u32 %v268, 16
        %v343 = vrot.slane %v341, 7
        %v344 = vshll.u32 %v268, 16
        %v346 = vor.u32 %v343, %v344
        %v347 = vsel %vm297, %v339, %v346
        %v348 = vrot.slane %v343, 4
        %v350 = vshrl.u32 %v269, 16
        %v352 = vrot.slane %v350, 7
        %v353 = vshll.u32 %v269, 16
        %v355 = vor.u32 %v352, %v353
        %v356 = vrot.slane %v352, 4
        %v358 = vshrl.u32 %v270, 16
        %v360 = vrot.slane %v358, 7
        %v361 = vshll.u32 %v270, 16
        %v363 = vor.u32 %v360, %v361
        %v364 = vsel %vm297, %v356, %v363
        %v365 = vrot.slane %v360, 4
        %v367 = vshrl.u32 %v271, 16
        %v369 = vrot.slane %v367, 7
        %v370 = vshll.u32 %v271, 16
        %v372 = vor.u32 %v369, %v370
        %v373 = vrot.slane %v369, 4
        %v375 = vshrl.u32 %v272, 16
        %v377 = vrot.slane %v375, 7
        %v378 = vshll.u32 %v272, 16
        %v380 = vor.u32 %v377, %v378
        %v381 = vsel %vm297, %v373, %v380
        %v382 = vrot.slane %v377, 4
        %v384 = vshrl.u32 %v273, 16
        %v386 = vrot.slane %v384, 7
        %v387 = vshll.u32 %v273, 16
        %v389 = vor.u32 %v386, %v387
        %v390 = vrot.slane %v386, 4
        %v392 = vshrl.u32 %v274, 16
        %v394 = vrot.slane %v392, 7
        %v395 = vshll.u32 %v274, 16
        %v397 = vor.u32 %v394, %v395
        %v398 = vsel %vm297, %v390, %v397
        %v399 = vrot.slane %v394, 4
        %v401 = vshrl.u32 %v275, 16
        %v403 = vrot.slane %v401, 7
        %v404 = vshll.u32 %v275, 16
        %v406 = vor.u32 %v403, %v404
        %v407 = vrot.slane %v403, 4
        %v409 = vshrl.u32 %v276, 16
        %v411 = vrot.slane %v409, 7
        %v412 = vshll.u32 %v276, 16
        %v414 = vor.u32 %v411, %v412
        %v415 = vsel %vm297, %v407, %v414
        %v416 = vrot.slane %v411, 4
        %v418 = vshrl.u32 %v277, 16
        %v420 = vrot.slane %v418, 7
        %v421 = vshll.u32 %v277, 16
        %v423 = vor.u32 %v420, %v421
        %v424 = vrot.slane %v420, 4
        %v426 = vshrl.u32 %v278, 16
        %v428 = vrot.slane %v426, 7
        %v429 = vshll.u32 %v278, 16
        %v431 = vor.u32 %v428, %v429
        %v432 = vsel %vm297, %v424, %v431
        %v433 = vrot.slane %v428, 4
        %v435 = vshrl.u32 %v279, 16
        %v437 = vrot.slane %v435, 7
        %v438 = vshll.u32 %v279, 16
        %v440 = vor.u32 %v437, %v438
        %v441 = vrot.slane %v437, 4
        %v443 = vshrl.u32 %v280, 16
        %v445 = vrot.slane %v443, 7
        %v446 = vshll.u32 %v280, 16
        %v448 = vor.u32 %v445, %v446
        %v449 = vsel %vm297, %v441, %v448
        %v450 = vrot.slane %v445, 4
        %v452 = vshrl.u32 %v281, 16
        %v454 = vrot.slane %v452, 7
        %v455 = vshll.u32 %v281, 16
        %v457 = vor.u32 %v454, %v455
        %v458 = vrot.slane %v454, 4
        %v460 = vshrl.u32 %v282, 16
        %v462 = vrot.slane %v460, 7
        %v463 = vshll.u32 %v282, 16
        %v465 = vor.u32 %v462, %v463
        %v466 = vsel %vm297, %v458, %v465
        %v467 = vrot.slane %v462, 4
        %v469 = vshrl.u32 %v283, 16
        %v471 = vrot.slane %v469, 7
        %v472 = vshll.u32 %v283, 16
        %v474 = vor.u32 %v471, %v472
        %v475 = vrot.slane %v471, 4
        %v477 = vshrl.u32 %v284, 16
        %v479 = vrot.slane %v477, 7
        %v480 = vshll.u32 %v284, 16
        %v482 = vor.u32 %v479, %v480
        %v483 = vsel %vm297, %v475, %v482
        %v484 = vrot.slane %v479, 4
        %v486 = vshrl.u32 %v285, 16
        %v488 = vrot.slane %v486, 7
        %v489 = vshll.u32 %v285, 16
        %v491 = vor.u32 %v488, %v489
        %v492 = vrot.slane %v488, 4
        %v494 = vshrl.u32 %v286, 16
        %v496 = vrot.slane %v494, 7
        %v497 = vshll.u32 %v286, 16
        %v499 = vor.u32 %v496, %v497
        %v500 = vsel %vm297, %v492, %v499
        %v501 = vrot.slane %v496, 4
        %v503 = vshrl.u32 %v287, 16
        %v505 = vrot.slane %v503, 7
        %v506 = vshll.u32 %v287, 16
        %v508 = vor.u32 %v505, %v506
        %v509 = vrot.slane %v505, 4
        %v511 = vshrl.u32 %v288, 16
        %v513 = vrot.slane %v511, 7
        %v514 = vshll.u32 %v288, 16
        %v516 = vor.u32 %v513, %v514
        %v517 = vsel %vm297, %v509, %v516
        %v518 = vrot.slane %v513, 4
        %v520 = vshrl.u32 %v289, 16
        %v522 = vrot.slane %v520, 7
        %v523 = vshll.u32 %v289, 16
        %v525 = vor.u32 %v522, %v523
        %v526 = vrot.slane %v522, 4
        %v528 = vshrl.u32 %v290, 16
        %v530 = vrot.slane %v528, 7
        %v531 = vshll.u32 %v290, 16
        %v533 = vor.u32 %v530, %v531
        %v534 = vsel %vm297, %v526, %v533
        %v535 = vrot.slane %v530, 4
        %v537 = vshrl.u32 %v291, 16
        %v539 = vrot.slane %v537, 7
        %v540 = vshll.u32 %v291, 16
        %v542 = vor.u32 %v539, %v540
        %v543 = vrot.slane %v539, 4
        %v545 = vshrl.u32 %v292, 16
        %v547 = vrot.slane %v545, 7
        %v548 = vshll.u32 %v292, 16
        %v550 = vor.u32 %v547, %v548
        %v551 = vsel %vm297, %v543, %v550
        %v552 = vrot.slane %v547, 4
        %v554 = vshrl.u32 %v293, 16
        %v556 = vrot.slane %v554, 7
        %v557 = vshll.u32 %v293, 16
        %v559 = vor.u32 %v556, %v557
        %v560 = vrot.slane %v556, 4
        %v562 = vshrl.u32 %v294, 16
        %v564 = vrot.slane %v562, 7
        %v565 = vshll.u32 %v294, 16
        %v567 = vor.u32 %v564, %v565
        %v568 = vsel %vm297, %v560, %v567
        %v569 = vrot.slane %v564, 4
        %s618 = scalar_lea.vmem [#allocation2], 12
        %vm619 = vcmask 1043456
        %vm620 = vsmask.f32 7938
        %vm621 = vmand %vm619, %vm620
        %v622 = vld [vmem:[%s618] sm:$0xf]
        %v623 = vsel %vm621, %v304, %v622
        %624 = vst [vmem:[%s618] sm:$0xf] %v623
        %625 = vst [vmem:[%s618 + $0x4] sm:$0xf] %v313
        %vm626 = vcmask 1040384
        %vm627 = vmand %vm626, %vm295
        %v628 = vld [vmem:[%s618 + $0x8] sm:$0x1]
        %v629 = vsel %vm627, %v314, %v628
        %630 = vst [vmem:[%s618 + $0x8] sm:$0x1] %v629
        %v631 = vld [vmem:[%s618 + $0xc] sm:$0xf]
        %v632 = vsel %vm621, %v321, %v631
        %633 = vst [vmem:[%s618 + $0xc] sm:$0xf] %v632
        %634 = vst [vmem:[%s618 + $0x10] sm:$0xf] %v330
        %v635 = vld [vmem:[%s618 + $0x14] sm:$0x1]
        %v636 = vsel %vm627, %v331, %v635
        %637 = vst [vmem:[%s618 + $0x14] sm:$0x1] %v636
        %v638 = vld [vmem:[%s618 + $0x18] sm:$0xf]
        %v639 = vsel %vm621, %v338, %v638
        %640 = vst [vmem:[%s618 + $0x18] sm:$0xf] %v639
        %641 = vst [vmem:[%s618 + $0x1c] sm:$0xf] %v347
        %v642 = vld [vmem:[%s618 + $0x20] sm:$0x1]
        %v643 = vsel %vm627, %v348, %v642
        %644 = vst [vmem:[%s618 + $0x20] sm:$0x1] %v643
        %v645 = vld [vmem:[%s618 + $0x24] sm:$0xf]
        %v646 = vsel %vm621, %v355, %v645
        %647 = vst [vmem:[%s618 + $0x24] sm:$0xf] %v646
        %648 = vst [vmem:[%s618 + $0x28] sm:$0xf] %v364
        %v649 = vld [vmem:[%s618 + $0x2c] sm:$0x1]
        %v650 = vsel %vm627, %v365, %v649
        %651 = vst [vmem:[%s618 + $0x2c] sm:$0x1] %v650
        %v652 = vld [vmem:[%s618 + $0x30] sm:$0xf]
        %v653 = vsel %vm621, %v372, %v652
        %654 = vst [vmem:[%s618 + $0x30] sm:$0xf] %v653
        %655 = vst [vmem:[%s618 + $0x34] sm:$0xf] %v381
        %v656 = vld [vmem:[%s618 + $0x38] sm:$0x1]
        %v657 = vsel %vm627, %v382, %v656
        %658 = vst [vmem:[%s618 + $0x38] sm:$0x1] %v657
        %v659 = vld [vmem:[%s618 + $0x3c] sm:$0xf]
        %v660 = vsel %vm621, %v389, %v659
        %661 = vst [vmem:[%s618 + $0x3c] sm:$0xf] %v660
        %662 = vst [vmem:[%s618 + $0x40] sm:$0xf] %v398
        %v663 = vld [vmem:[%s618 + $0x44] sm:$0x1]
        %v664 = vsel %vm627, %v399, %v663
        %665 = vst [vmem:[%s618 + $0x44] sm:$0x1] %v664
        %v666 = vld [vmem:[%s618 + $0x48] sm:$0xf]
        %v667 = vsel %vm621, %v406, %v666
        %668 = vst [vmem:[%s618 + $0x48] sm:$0xf] %v667
        %669 = vst [vmem:[%s618 + $0x4c] sm:$0xf] %v415
        %v670 = vld [vmem:[%s618 + $0x50] sm:$0x1]
        %v671 = vsel %vm627, %v416, %v670
        %672 = vst [vmem:[%s618 + $0x50] sm:$0x1] %v671
        %v673 = vld [vmem:[%s618 + $0x54] sm:$0xf]
        %v674 = vsel %vm621, %v423, %v673
        %675 = vst [vmem:[%s618 + $0x54] sm:$0xf] %v674
        %676 = vst [vmem:[%s618 + $0x58] sm:$0xf] %v432
        %v677 = vld [vmem:[%s618 + $0x5c] sm:$0x1]
        %v678 = vsel %vm627, %v433, %v677
        %679 = vst [vmem:[%s618 + $0x5c] sm:$0x1] %v678
        %v680 = vld [vmem:[%s618 + $0x60] sm:$0xf]
        %v681 = vsel %vm621, %v440, %v680
        %682 = vst [vmem:[%s618 + $0x60] sm:$0xf] %v681
        %683 = vst [vmem:[%s618 + $0x64] sm:$0xf] %v449
        %v684 = vld [vmem:[%s618 + $0x68] sm:$0x1]
        %v685 = vsel %vm627, %v450, %v684
        %686 = vst [vmem:[%s618 + $0x68] sm:$0x1] %v685
        %v687 = vld [vmem:[%s618 + $0x6c] sm:$0xf]
        %v688 = vsel %vm621, %v457, %v687
        %689 = vst [vmem:[%s618 + $0x6c] sm:$0xf] %v688
        %690 = vst [vmem:[%s618 + $0x70] sm:$0xf] %v466
        %v691 = vld [vmem:[%s618 + $0x74] sm:$0x1]
        %v692 = vsel %vm627, %v467, %v691
        %693 = vst [vmem:[%s618 + $0x74] sm:$0x1] %v692
        %v694 = vld [vmem:[%s618 + $0x78] sm:$0xf]
        %v695 = vsel %vm621, %v474, %v694
        %696 = vst [vmem:[%s618 + $0x78] sm:$0xf] %v695
        %697 = vst [vmem:[%s618 + $0x7c] sm:$0xf] %v483
        %v698 = vld [vmem:[%s618 + $0x80] sm:$0x1]
        %v699 = vsel %vm627, %v484, %v698
        %700 = vst [vmem:[%s618 + $0x80] sm:$0x1] %v699
        %v701 = vld [vmem:[%s618 + $0x84] sm:$0xf]
        %v702 = vsel %vm621, %v491, %v701
        %703 = vst [vmem:[%s618 + $0x84] sm:$0xf] %v702
        %704 = vst [vmem:[%s618 + $0x88] sm:$0xf] %v500
        %v705 = vld [vmem:[%s618 + $0x8c] sm:$0x1]
        %v706 = vsel %vm627, %v501, %v705
        %707 = vst [vmem:[%s618 + $0x8c] sm:$0x1] %v706
        %v708 = vld [vmem:[%s618 + $0x90] sm:$0xf]
        %v709 = vsel %vm621, %v508, %v708
        %710 = vst [vmem:[%s618 + $0x90] sm:$0xf] %v709
        %711 = vst [vmem:[%s618 + $0x94] sm:$0xf] %v517
        %v712 = vld [vmem:[%s618 + $0x98] sm:$0x1]
        %v713 = vsel %vm627, %v518, %v712
        %714 = vst [vmem:[%s618 + $0x98] sm:$0x1] %v713
        %v715 = vld [vmem:[%s618 + $0x9c] sm:$0xf]
        %v716 = vsel %vm621, %v525, %v715
        %717 = vst [vmem:[%s618 + $0x9c] sm:$0xf] %v716
        %718 = vst [vmem:[%s618 + $0xa0] sm:$0xf] %v534
        %v719 = vld [vmem:[%s618 + $0xa4] sm:$0x1]
        %v720 = vsel %vm627, %v535, %v719
        %721 = vst [vmem:[%s618 + $0xa4] sm:$0x1] %v720
        %v722 = vld [vmem:[%s618 + $0xa8] sm:$0xf]
        %v723 = vsel %vm621, %v542, %v722
        %724 = vst [vmem:[%s618 + $0xa8] sm:$0xf] %v723
        %725 = vst [vmem:[%s618 + $0xac] sm:$0xf] %v551
        %v726 = vld [vmem:[%s618 + $0xb0] sm:$0x1]
        %v727 = vsel %vm627, %v552, %v726
        %728 = vst [vmem:[%s618 + $0xb0] sm:$0x1] %v727
        %v729 = vld [vmem:[%s618 + $0xb4] sm:$0xf]
        %v730 = vsel %vm621, %v559, %v729
        %731 = vst [vmem:[%s618 + $0xb4] sm:$0xf] %v730
        %732 = vst [vmem:[%s618 + $0xb8] sm:$0xf] %v568
        %v733 = vld [vmem:[%s618 + $0xbc] sm:$0x1]
        %v734 = vsel %vm627, %v569, %v733
        %735 = vst [vmem:[%s618 + $0xbc] sm:$0x1] %v734
        %v736 = vld [vmem:[%s2] sm:$0x1]
        %v737 = vld [vmem:[#allocation2] sm:$0xf]
        %v738 = vld [vmem:[#allocation2 + $0x4] sm:$0xf]
        %v739 = vld [vmem:[#allocation2 + $0x8] sm:$0x1]
        %v740 = vld [vmem:[#allocation2 + $0xc] sm:$0xf]
        %v741 = vld [vmem:[#allocation2 + $0x10] sm:$0xf]
        %v742 = vld [vmem:[#allocation2 + $0x14] sm:$0x1]
        %v743 = vld [vmem:[#allocation2 + $0x18] sm:$0xf]
        %v744 = vld [vmem:[#allocation2 + $0x1c] sm:$0xf]
        %v745 = vld [vmem:[#allocation2 + $0x20] sm:$0x1]
        %v746 = vld [vmem:[#allocation2 + $0x24] sm:$0xf]
        %v747 = vld [vmem:[#allocation2 + $0x28] sm:$0xf]
        %v748 = vld [vmem:[#allocation2 + $0x2c] sm:$0x1]
        %v749 = vld [vmem:[#allocation2 + $0x30] sm:$0xf]
        %v750 = vld [vmem:[#allocation2 + $0x34] sm:$0xf]
        %v751 = vld [vmem:[#allocation2 + $0x38] sm:$0x1]
        %v752 = vld [vmem:[#allocation2 + $0x3c] sm:$0xf]
        %v753 = vld [vmem:[#allocation2 + $0x40] sm:$0xf]
        %v754 = vld [vmem:[#allocation2 + $0x44] sm:$0x1]
        %v755 = vld [vmem:[#allocation2 + $0x48] sm:$0xf]
        %v756 = vld [vmem:[#allocation2 + $0x4c] sm:$0xf]
        %v757 = vld [vmem:[#allocation2 + $0x50] sm:$0x1]
        %v758 = vld [vmem:[#allocation2 + $0x54] sm:$0xf]
        %v759 = vld [vmem:[#allocation2 + $0x58] sm:$0xf]
        %v760 = vld [vmem:[#allocation2 + $0x5c] sm:$0x1]
        %v761 = vld [vmem:[#allocation2 + $0x60] sm:$0xf]
        %v762 = vld [vmem:[#allocation2 + $0x64] sm:$0xf]
        %v763 = vld [vmem:[#allocation2 + $0x68] sm:$0x1]
        %v764 = vld [vmem:[#allocation2 + $0x6c] sm:$0xf]
        %v765 = vld [vmem:[#allocation2 + $0x70] sm:$0xf]
        %v766 = vld [vmem:[#allocation2 + $0x74] sm:$0x1]
        %v767 = vld [vmem:[#allocation2 + $0x78] sm:$0xf]
        %v768 = vld [vmem:[#allocation2 + $0x7c] sm:$0xf]
        %v769 = vld [vmem:[#allocation2 + $0x80] sm:$0x1]
        %v770 = vld [vmem:[#allocation2 + $0x84] sm:$0xf]
        %v771 = vld [vmem:[#allocation2 + $0x88] sm:$0xf]
        %v772 = vld [vmem:[#allocation2 + $0x8c] sm:$0x1]
        %v773 = vld [vmem:[#allocation2 + $0x90] sm:$0xf]
        %v774 = vld [vmem:[#allocation2 + $0x94] sm:$0xf]
        %v775 = vld [vmem:[#allocation2 + $0x98] sm:$0x1]
        %v776 = vld [vmem:[#allocation2 + $0x9c] sm:$0xf]
        %v777 = vld [vmem:[#allocation2 + $0xa0] sm:$0xf]
        %v778 = vld [vmem:[#allocation2 + $0xa4] sm:$0x1]
        %v779 = vld [vmem:[#allocation2 + $0xa8] sm:$0xf]
        %v780 = vld [vmem:[#allocation2 + $0xac] sm:$0xf]
        %v781 = vld [vmem:[#allocation2 + $0xb0] sm:$0x1]
        %v782 = vld [vmem:[#allocation2 + $0xb4] sm:$0xf]
        %v783 = vld [vmem:[#allocation2 + $0xb8] sm:$0xf]
        %v784 = vld [vmem:[#allocation2 + $0xbc] sm:$0x1]
        %v785 = vld [vmem:[#allocation2 + $0xc0] sm:$0xf]
        %v786 = vld [vmem:[#allocation2 + $0xc4] sm:$0xf]
        %v787 = vld [vmem:[#allocation2 + $0xc8] sm:$0x1]
        %v788 = vld [vmem:[#allocation2 + $0xcc] sm:$0xf]
        %v789 = vld [vmem:[#allocation2 + $0xd0] sm:$0xf]
        %v790 = vld [vmem:[#allocation2 + $0xd4] sm:$0x1]
        %v791 = vld [vmem:[#allocation6] sm:$0xf]
        %v792 = vld [vmem:[#allocation6 + $0x4] sm:$0xf]
        %v793 = vld [vmem:[#allocation6 + $0x8] sm:$0xf]
        %v794 = vld [vmem:[#allocation6 + $0xc] sm:$0xf]
        %v795 = vld [vmem:[#allocation6 + $0x10] sm:$0xf]
        %v796 = vld [vmem:[#allocation6 + $0x14] sm:$0xf]
        %v797 = vld [vmem:[#allocation6 + $0x18] sm:$0xf]
        %v798 = vld [vmem:[#allocation6 + $0x1c] sm:$0xf]
        %v799 = vld [vmem:[#allocation6 + $0x20] sm:$0xf]
        %v800 = vld [vmem:[#allocation6 + $0x24] sm:$0xf]
        %v801 = vld [vmem:[#allocation6 + $0x28] sm:$0xf]
        %v802 = vld [vmem:[#allocation6 + $0x2c] sm:$0xf]
        %v803 = vld [vmem:[#allocation6 + $0x30] sm:$0xf]
        %v804 = vld [vmem:[#allocation6 + $0x34] sm:$0xf]
        %v805 = vld [vmem:[#allocation6 + $0x38] sm:$0xf]
        %v806 = vld [vmem:[#allocation6 + $0x3c] sm:$0xf]
        %vm807 = vsmask.f32 3328
        %vm808 = vsmask.f32 7440
        %vm809 = vmor %vm807, %vm808
        %v811 = vshrl.u32 %v737, 16
        %v813 = vrot.slane %v811, 4
        %v814 = vshll.u32 %v737, 16
        %v816 = vrot.slane %v814, 5
        %v817 = vor.u32 %v813, %v816
        %v818 = vrot.slane %v817, 4
        %v820 = vshll.u32 %v738, 16
        %v822 = vrot.slane %v820, 5
        %v823 = vsel %vm809, %v818, %v822
        %v824 = vshrl.u32 %v738, 16
        %v826 = vrot.slane %v824, 4
        %v827 = vor.u32 %v826, %v822
        %v828 = vrot.slane %v827, 4
        %v830 = vshll.u32 %v739, 16
        %v832 = vrot.slane %v830, 5
        %v833 = vsel %vm809, %v828, %v832
        %v835 = vshrl.u32 %v740, 16
        %v837 = vrot.slane %v835, 4
        %v838 = vshll.u32 %v740, 16
        %v840 = vrot.slane %v838, 5
        %v841 = vor.u32 %v837, %v840
        %v842 = vrot.slane %v841, 4
        %v844 = vshll.u32 %v741, 16
        %v846 = vrot.slane %v844, 5
        %v847 = vsel %vm809, %v842, %v846
        %v848 = vshrl.u32 %v741, 16
        %v850 = vrot.slane %v848, 4
        %v851 = vor.u32 %v850, %v846
        %v852 = vrot.slane %v851, 4
        %v854 = vshll.u32 %v742, 16
        %v856 = vrot.slane %v854, 5
        %v857 = vsel %vm809, %v852, %v856
        %v859 = vshrl.u32 %v743, 16
        %v861 = vrot.slane %v859, 4
        %v862 = vshll.u32 %v743, 16
        %v864 = vrot.slane %v862, 5
        %v865 = vor.u32 %v861, %v864
        %v866 = vrot.slane %v865, 4
        %v868 = vshll.u32 %v744, 16
        %v870 = vrot.slane %v868, 5
        %v871 = vsel %vm809, %v866, %v870
        %v872 = vshrl.u32 %v744, 16
        %v874 = vrot.slane %v872, 4
        %v875 = vor.u32 %v874, %v870
        %v876 = vrot.slane %v875, 4
        %v878 = vshll.u32 %v745, 16
        %v880 = vrot.slane %v878, 5
        %v881 = vsel %vm809, %v876, %v880
        %v883 = vshrl.u32 %v746, 16
        %v885 = vrot.slane %v883, 4
        %v886 = vshll.u32 %v746, 16
        %v888 = vrot.slane %v886, 5
        %v889 = vor.u32 %v885, %v888
        %v890 = vrot.slane %v889, 4
        %v892 = vshll.u32 %v747, 16
        %v894 = vrot.slane %v892, 5
        %v895 = vsel %vm809, %v890, %v894
        %v896 = vshrl.u32 %v747, 16
        %v898 = vrot.slane %v896, 4
        %v899 = vor.u32 %v898, %v894
        %v900 = vrot.slane %v899, 4
        %v902 = vshll.u32 %v748, 16
        %v904 = vrot.slane %v902, 5
        %v905 = vsel %vm809, %v900, %v904
        %v907 = vshrl.u32 %v749, 16
        %v909 = vrot.slane %v907, 4
        %v910 = vshll.u32 %v749, 16
        %v912 = vrot.slane %v910, 5
        %v913 = vor.u32 %v909, %v912
        %v914 = vrot.slane %v913, 4
        %v916 = vshll.u32 %v750, 16
        %v918 = vrot.slane %v916, 5
        %v919 = vsel %vm809, %v914, %v918
        %v920 = vshrl.u32 %v750, 16
        %v922 = vrot.slane %v920, 4
        %v923 = vor.u32 %v922, %v918
        %v924 = vrot.slane %v923, 4
        %v926 = vshll.u32 %v751, 16
        %v928 = vrot.slane %v926, 5
        %v929 = vsel %vm809, %v924, %v928
        %v931 = vshrl.u32 %v752, 16
        %v933 = vrot.slane %v931, 4
        %v934 = vshll.u32 %v752, 16
        %v936 = vrot.slane %v934, 5
        %v937 = vor.u32 %v933, %v936
        %v938 = vrot.slane %v937, 4
        %v940 = vshll.u32 %v753, 16
        %v942 = vrot.slane %v940, 5
        %v943 = vsel %vm809, %v938, %v942
        %v944 = vshrl.u32 %v753, 16
        %v946 = vrot.slane %v944, 4
        %v947 = vor.u32 %v946, %v942
        %v948 = vrot.slane %v947, 4
        %v950 = vshll.u32 %v754, 16
        %v952 = vrot.slane %v950, 5
        %v953 = vsel %vm809, %v948, %v952
        %v955 = vshrl.u32 %v755, 16
        %v957 = vrot.slane %v955, 4
        %v958 = vshll.u32 %v755, 16
        %v960 = vrot.slane %v958, 5
        %v961 = vor.u32 %v957, %v960
        %v962 = vrot.slane %v961, 4
        %v964 = vshll.u32 %v756, 16
        %v966 = vrot.slane %v964, 5
        %v967 = vsel %vm809, %v962, %v966
        %v968 = vshrl.u32 %v756, 16
        %v970 = vrot.slane %v968, 4
        %v971 = vor.u32 %v970, %v966
        %v972 = vrot.slane %v971, 4
        %v974 = vshll.u32 %v757, 16
        %v976 = vrot.slane %v974, 5
        %v977 = vsel %vm809, %v972, %v976
        %v979 = vshrl.u32 %v758, 16
        %v981 = vrot.slane %v979, 4
        %v982 = vshll.u32 %v758, 16
        %v984 = vrot.slane %v982, 5
        %v985 = vor.u32 %v981, %v984
        %v986 = vrot.slane %v985, 4
        %v988 = vshll.u32 %v759, 16
        %v990 = vrot.slane %v988, 5
        %v991 = vsel %vm809, %v986, %v990
        %v992 = vshrl.u32 %v759, 16
        %v994 = vrot.slane %v992, 4
        %v995 = vor.u32 %v994, %v990
        %v996 = vrot.slane %v995, 4
        %v998 = vshll.u32 %v760, 16
        %v1000 = vrot.slane %v998, 5
        %v1001 = vsel %vm809, %v996, %v1000
        %v1003 = vshrl.u32 %v761, 16
        %v1005 = vrot.slane %v1003, 4
        %v1006 = vshll.u32 %v761, 16
        %v1008 = vrot.slane %v1006, 5
        %v1009 = vor.u32 %v1005, %v1008
        %v1010 = vrot.slane %v1009, 4
        %v1012 = vshll.u32 %v762, 16
        %v1014 = vrot.slane %v1012, 5
        %v1015 = vsel %vm809, %v1010, %v1014
        %v1016 = vshrl.u32 %v762, 16
        %v1018 = vrot.slane %v1016, 4
        %v1019 = vor.u32 %v1018, %v1014
        %v1020 = vrot.slane %v1019, 4
        %v1022 = vshll.u32 %v763, 16
        %v1024 = vrot.slane %v1022, 5
        %v1025 = vsel %vm809, %v1020, %v1024
        %v1027 = vshrl.u32 %v764, 16
        %v1029 = vrot.slane %v1027, 4
        %v1030 = vshll.u32 %v764, 16
        %v1032 = vrot.slane %v1030, 5
        %v1033 = vor.u32 %v1029, %v1032
        %v1034 = vrot.slane %v1033, 4
        %v1036 = vshll.u32 %v765, 16
        %v1038 = vrot.slane %v1036, 5
        %v1039 = vsel %vm809, %v1034, %v1038
        %v1040 = vshrl.u32 %v765, 16
        %v1042 = vrot.slane %v1040, 4
        %v1043 = vor.u32 %v1042, %v1038
        %v1044 = vrot.slane %v1043, 4
        %v1046 = vshll.u32 %v766, 16
        %v1048 = vrot.slane %v1046, 5
        %v1049 = vsel %vm809, %v1044, %v1048
        %v1051 = vshrl.u32 %v767, 16
        %v1053 = vrot.slane %v1051, 4
        %v1054 = vshll.u32 %v767, 16
        %v1056 = vrot.slane %v1054, 5
        %v1057 = vor.u32 %v1053, %v1056
        %v1058 = vrot.slane %v1057, 4
        %v1060 = vshll.u32 %v768, 16
        %v1062 = vrot.slane %v1060, 5
        %v1063 = vsel %vm809, %v1058, %v1062
        %v1064 = vshrl.u32 %v768, 16
        %v1066 = vrot.slane %v1064, 4
        %v1067 = vor.u32 %v1066, %v1062
        %v1068 = vrot.slane %v1067, 4
        %v1070 = vshll.u32 %v769, 16
        %v1072 = vrot.slane %v1070, 5
        %v1073 = vsel %vm809, %v1068, %v1072
        %v1075 = vshrl.u32 %v770, 16
        %v1077 = vrot.slane %v1075, 4
        %v1078 = vshll.u32 %v770, 16
        %v1080 = vrot.slane %v1078, 5
        %v1081 = vor.u32 %v1077, %v1080
        %v1082 = vrot.slane %v1081, 4
        %v1084 = vshll.u32 %v771, 16
        %v1086 = vrot.slane %v1084, 5
        %v1087 = vsel %vm809, %v1082, %v1086
        %v1088 = vshrl.u32 %v771, 16
        %v1090 = vrot.slane %v1088, 4
        %v1091 = vor.u32 %v1090, %v1086
        %v1092 = vrot.slane %v1091, 4
        %v1094 = vshll.u32 %v772, 16
        %v1096 = vrot.slane %v1094, 5
        %v1097 = vsel %vm809, %v1092, %v1096
        %v1099 = vshrl.u32 %v773, 16
        %v1101 = vrot.slane %v1099, 4
        %v1102 = vshll.u32 %v773, 16
        %v1104 = vrot.slane %v1102, 5
        %v1105 = vor.u32 %v1101, %v1104
        %v1106 = vrot.slane %v1105, 4
        %v1108 = vshll.u32 %v774, 16
        %v1110 = vrot.slane %v1108, 5
        %v1111 = vsel %vm809, %v1106, %v1110
        %v1112 = vshrl.u32 %v774, 16
        %v1114 = vrot.slane %v1112, 4
        %v1115 = vor.u32 %v1114, %v1110
        %v1116 = vrot.slane %v1115, 4
        %v1118 = vshll.u32 %v775, 16
        %v1120 = vrot.slane %v1118, 5
        %v1121 = vsel %vm809, %v1116, %v1120
        %v1123 = vshrl.u32 %v776, 16
        %v1125 = vrot.slane %v1123, 4
        %v1126 = vshll.u32 %v776, 16
        %v1128 = vrot.slane %v1126, 5
        %v1129 = vor.u32 %v1125, %v1128
        %v1130 = vrot.slane %v1129, 4
        %v1132 = vshll.u32 %v777, 16
        %v1134 = vrot.slane %v1132, 5
        %v1135 = vsel %vm809, %v1130, %v1134
        %v1136 = vshrl.u32 %v777, 16
        %v1138 = vrot.slane %v1136, 4
        %v1139 = vor.u32 %v1138, %v1134
        %v1140 = vrot.slane %v1139, 4
        %v1142 = vshll.u32 %v778, 16
        %v1144 = vrot.slane %v1142, 5
        %v1145 = vsel %vm809, %v1140, %v1144
        %v1147 = vshrl.u32 %v779, 16
        %v1149 = vrot.slane %v1147, 4
        %v1150 = vshll.u32 %v779, 16
        %v1152 = vrot.slane %v1150, 5
        %v1153 = vor.u32 %v1149, %v1152
        %v1154 = vrot.slane %v1153, 4
        %v1156 = vshll.u32 %v780, 16
        %v1158 = vrot.slane %v1156, 5
        %v1159 = vsel %vm809, %v1154, %v1158
        %v1160 = vshrl.u32 %v780, 16
        %v1162 = vrot.slane %v1160, 4
        %v1163 = vor.u32 %v1162, %v1158
        %v1164 = vrot.slane %v1163, 4
        %v1166 = vshll.u32 %v781, 16
        %v1168 = vrot.slane %v1166, 5
        %v1169 = vsel %vm809, %v1164, %v1168
        %v1171 = vshrl.u32 %v782, 16
        %v1173 = vrot.slane %v1171, 4
        %v1174 = vshll.u32 %v782, 16
        %v1176 = vrot.slane %v1174, 5
        %v1177 = vor.u32 %v1173, %v1176
        %v1178 = vrot.slane %v1177, 4
        %v1180 = vshll.u32 %v783, 16
        %v1182 = vrot.slane %v1180, 5
        %v1183 = vsel %vm809, %v1178, %v1182
        %v1184 = vshrl.u32 %v783, 16
        %v1186 = vrot.slane %v1184, 4
        %v1187 = vor.u32 %v1186, %v1182
        %v1188 = vrot.slane %v1187, 4
        %v1190 = vshll.u32 %v784, 16
        %v1192 = vrot.slane %v1190, 5
        %v1193 = vsel %vm809, %v1188, %v1192
        %s1194 = scalar_lea.vmem [#allocation6], 64
        %v1195 = vld [vmem:[%s1194] sm:$0xf]
        %v1196 = vld [vmem:[%s1194 + $0x4] sm:$0xf]
        %v1197 = vld [vmem:[%s1194 + $0x8] sm:$0xf]
        %v1198 = vld [vmem:[%s1194 + $0xc] sm:$0xf]
        %v1199 = vld [vmem:[%s1194 + $0x10] sm:$0xf]
        %v1200 = vld [vmem:[%s1194 + $0x14] sm:$0xf]
        %v1201 = vld [vmem:[%s1194 + $0x18] sm:$0xf]
        %v1202 = vld [vmem:[%s1194 + $0x1c] sm:$0xf]
        %v1203 = vld [vmem:[%s1194 + $0x20] sm:$0xf]
        %v1204 = vld [vmem:[%s1194 + $0x24] sm:$0xf]
        %v1205 = vld [vmem:[%s1194 + $0x28] sm:$0xf]
        %v1206 = vld [vmem:[%s1194 + $0x2c] sm:$0xf]
        %v1207 = vld [vmem:[%s1194 + $0x30] sm:$0xf]
        %v1208 = vld [vmem:[%s1194 + $0x34] sm:$0xf]
        %v1209 = vld [vmem:[%s1194 + $0x38] sm:$0xf]
        %v1210 = vld [vmem:[%s1194 + $0x3c] sm:$0xf]
        %v1211 = vunpack.c.l.b16 %v823
        %v1212 = vunpack.c.l.b16 %v833
        %v1213 = vunpack.c.l.b16 %v847
        %v1214 = vunpack.c.l.b16 %v857
        %v1215 = vunpack.c.l.b16 %v871
        %v1216 = vunpack.c.l.b16 %v881
        %v1217 = vunpack.c.l.b16 %v895
        %v1218 = vunpack.c.l.b16 %v905
        %v1219 = vunpack.c.l.b16 %v919
        %v1220 = vunpack.c.l.b16 %v929
        %v1221 = vunpack.c.l.b16 %v943
        %v1222 = vunpack.c.l.b16 %v953
        %v1223 = vunpack.c.l.b16 %v967
        %v1224 = vunpack.c.l.b16 %v977
        %v1225 = vunpack.c.l.b16 %v991
        %v1226 = vunpack.c.l.b16 %v1001
        %v1227 = vunpack.c.l.b16 %v1015
        %v1228 = vunpack.c.l.b16 %v1025
        %v1229 = vunpack.c.l.b16 %v1039
        %v1230 = vunpack.c.l.b16 %v1049
        %v1231 = vunpack.c.l.b16 %v1063
        %v1232 = vunpack.c.l.b16 %v1073
        %v1233 = vunpack.c.l.b16 %v1087
        %v1234 = vunpack.c.l.b16 %v1097
        %v1235 = vunpack.c.l.b16 %v1111
        %v1236 = vunpack.c.l.b16 %v1121
        %v1237 = vunpack.c.l.b16 %v1135
        %v1238 = vunpack.c.l.b16 %v1145
        %v1239 = vunpack.c.l.b16 %v1159
        %v1240 = vunpack.c.l.b16 %v1169
        %v1241 = vunpack.c.l.b16 %v1183
        %v1242 = vunpack.c.l.b16 %v1193
        %v1243 = vpack.c.b16 %v1212, %v1211
        %v1244 = vpack.c.b16 %v1214, %v1213
        %v1245 = vpack.c.b16 %v1216, %v1215
        %v1246 = vpack.c.b16 %v1218, %v1217
        %v1247 = vpack.c.b16 %v1220, %v1219
        %v1248 = vpack.c.b16 %v1222, %v1221
        %v1249 = vpack.c.b16 %v1224, %v1223
        %v1250 = vpack.c.b16 %v1226, %v1225
        %v1251 = vpack.c.b16 %v1228, %v1227
        %v1252 = vpack.c.b16 %v1230, %v1229
        %v1253 = vpack.c.b16 %v1232, %v1231
        %v1254 = vpack.c.b16 %v1234, %v1233
        %v1255 = vpack.c.b16 %v1236, %v1235
        %v1256 = vpack.c.b16 %v1238, %v1237
        %v1257 = vpack.c.b16 %v1240, %v1239
        %v1258 = vpack.c.b16 %v1242, %v1241
        %v1291 = vunpack.c.l.b16 %v1195
        %v1292 = vunpack.c.l.b16 %v1196
        %v1293 = vunpack.c.l.b16 %v1197
        %v1294 = vunpack.c.l.b16 %v1198
        %v1295 = vunpack.c.l.b16 %v1199
        %v1296 = vunpack.c.l.b16 %v1200
        %v1297 = vunpack.c.l.b16 %v1201
        %v1298 = vunpack.c.l.b16 %v1202
        %v1299 = vunpack.c.l.b16 %v1203
        %v1300 = vunpack.c.l.b16 %v1204
        %v1301 = vunpack.c.l.b16 %v1205
        %v1302 = vunpack.c.l.b16 %v1206
        %v1303 = vunpack.c.l.b16 %v1207
        %v1304 = vunpack.c.l.b16 %v1208
        %v1305 = vunpack.c.l.b16 %v1209
        %v1306 = vunpack.c.l.b16 %v1210
        %v1307 = vpack.c.b16 %v1292, %v1291
        %v1308 = vpack.c.b16 %v1294, %v1293
        %v1309 = vpack.c.b16 %v1296, %v1295
        %v1310 = vpack.c.b16 %v1298, %v1297
        %v1311 = vpack.c.b16 %v1300, %v1299
        %v1312 = vpack.c.b16 %v1302, %v1301
        %v1313 = vpack.c.b16 %v1304, %v1303
        %v1314 = vpack.c.b16 %v1306, %v1305
        %1323 = vmatpush.bf16.msra.mxu0 %v1314
        %1324 = vmatpush.bf16.msra.mxu0 %v1313
        %1325 = vmatpush.bf16.msra.mxu0 %v1312
        %1326 = vmatpush.bf16.msra.mxu0 %v1311
        %1327 = vmatpush.bf16.msra.mxu0 %v1310
        %1328 = vmatpush.bf16.msra.mxu0 %v1309
        %1329 = vmatpush.bf16.msra.mxu0 %v1308
        %1330 = vmatpush.bf16.msra.mxu0 %v1307
        %1331 = vmatmul.bf16.gmra.mxu0 %v1243
        %v1332 = vpop.f32.mrf.mxu0
        %v1333 = vadd.f32 0.0, %v1332
        %v1334 = vpop.f32.mrf.mxu0
        %v1335 = vadd.f32 0.0, %v1334
        %1336 = vmatmul.bf16.gmra.mxu0 %v1244
        %v1337 = vpop.f32.mrf.mxu0
        %v1338 = vadd.f32 0.0, %v1337
        %v1339 = vpop.f32.mrf.mxu0
        %v1340 = vadd.f32 0.0, %v1339
        %1341 = vmatmul.bf16.gmra.mxu0 %v1245
        %v1342 = vpop.f32.mrf.mxu0
        %v1343 = vadd.f32 0.0, %v1342
        %v1344 = vpop.f32.mrf.mxu0
        %v1345 = vadd.f32 0.0, %v1344
        %1346 = vmatmul.bf16.gmra.mxu0 %v1246
        %v1347 = vpop.f32.mrf.mxu0
        %v1348 = vadd.f32 0.0, %v1347
        %v1349 = vpop.f32.mrf.mxu0
        %v1350 = vadd.f32 0.0, %v1349
        %1351 = vmatmul.bf16.gmra.mxu0 %v1247
        %v1352 = vpop.f32.mrf.mxu0
        %v1353 = vadd.f32 0.0, %v1352
        %v1354 = vpop.f32.mrf.mxu0
        %v1355 = vadd.f32 0.0, %v1354
        %1356 = vmatmul.bf16.gmra.mxu0 %v1248
        %v1357 = vpop.f32.mrf.mxu0
        %v1358 = vadd.f32 0.0, %v1357
        %v1359 = vpop.f32.mrf.mxu0
        %v1360 = vadd.f32 0.0, %v1359
        %1361 = vmatmul.bf16.gmra.mxu0 %v1249
        %v1362 = vpop.f32.mrf.mxu0
        %v1363 = vadd.f32 0.0, %v1362
        %v1364 = vpop.f32.mrf.mxu0
        %v1365 = vadd.f32 0.0, %v1364
        %1366 = vmatmul.bf16.gmra.mxu0 %v1250
        %v1367 = vpop.f32.mrf.mxu0
        %v1368 = vadd.f32 0.0, %v1367
        %v1369 = vpop.f32.mrf.mxu0
        %v1370 = vadd.f32 0.0, %v1369
        %1371 = vmatmul.bf16.gmra.mxu0 %v1251
        %v1372 = vpop.f32.mrf.mxu0
        %v1373 = vadd.f32 0.0, %v1372
        %v1374 = vpop.f32.mrf.mxu0
        %v1375 = vadd.f32 0.0, %v1374
        %1376 = vmatmul.bf16.gmra.mxu0 %v1252
        %v1377 = vpop.f32.mrf.mxu0
        %v1378 = vadd.f32 0.0, %v1377
        %v1379 = vpop.f32.mrf.mxu0
        %v1380 = vadd.f32 0.0, %v1379
        %1381 = vmatmul.bf16.gmra.mxu0 %v1253
        %v1382 = vpop.f32.mrf.mxu0
        %v1383 = vadd.f32 0.0, %v1382
        %v1384 = vpop.f32.mrf.mxu0
        %v1385 = vadd.f32 0.0, %v1384
        %1386 = vmatmul.bf16.gmra.mxu0 %v1254
        %v1387 = vpop.f32.mrf.mxu0
        %v1388 = vadd.f32 0.0, %v1387
        %v1389 = vpop.f32.mrf.mxu0
        %v1390 = vadd.f32 0.0, %v1389
        %1391 = vmatmul.bf16.gmra.mxu0 %v1255
        %v1392 = vpop.f32.mrf.mxu0
        %v1393 = vadd.f32 0.0, %v1392
        %v1394 = vpop.f32.mrf.mxu0
        %v1395 = vadd.f32 0.0, %v1394
        %1396 = vmatmul.bf16.gmra.mxu0 %v1256
        %v1397 = vpop.f32.mrf.mxu0
        %v1398 = vadd.f32 0.0, %v1397
        %v1399 = vpop.f32.mrf.mxu0
        %v1400 = vadd.f32 0.0, %v1399
        %1401 = vmatmul.bf16.gmra.mxu0 %v1257
        %v1402 = vpop.f32.mrf.mxu0
        %v1403 = vadd.f32 0.0, %v1402
        %v1404 = vpop.f32.mrf.mxu0
        %v1405 = vadd.f32 0.0, %v1404
        %1406 = vmatmul.bf16.gmra.mxu0 %v1258
        %v1407 = vpop.f32.mrf.mxu0
        %v1408 = vadd.f32 0.0, %v1407
        %v1409 = vpop.f32.mrf.mxu0
        %v1410 = vadd.f32 0.0, %v1409
        %1411 = vdwg.mxu0
        %v1444 = vunpack.c.l.b16 %v737
        %v1445 = vunpack.c.l.b16 %v738
        %v1446 = vunpack.c.l.b16 %v740
        %v1447 = vunpack.c.l.b16 %v741
        %v1448 = vunpack.c.l.b16 %v743
        %v1449 = vunpack.c.l.b16 %v744
        %v1450 = vunpack.c.l.b16 %v746
        %v1451 = vunpack.c.l.b16 %v747
        %v1452 = vunpack.c.l.b16 %v749
        %v1453 = vunpack.c.l.b16 %v750
        %v1454 = vunpack.c.l.b16 %v752
        %v1455 = vunpack.c.l.b16 %v753
        %v1456 = vunpack.c.l.b16 %v755
        %v1457 = vunpack.c.l.b16 %v756
        %v1458 = vunpack.c.l.b16 %v758
        %v1459 = vunpack.c.l.b16 %v759
        %v1460 = vunpack.c.l.b16 %v761
        %v1461 = vunpack.c.l.b16 %v762
        %v1462 = vunpack.c.l.b16 %v764
        %v1463 = vunpack.c.l.b16 %v765
        %v1464 = vunpack.c.l.b16 %v767
        %v1465 = vunpack.c.l.b16 %v768
        %v1466 = vunpack.c.l.b16 %v770
        %v1467 = vunpack.c.l.b16 %v771
        %v1468 = vunpack.c.l.b16 %v773
        %v1469 = vunpack.c.l.b16 %v774
        %v1470 = vunpack.c.l.b16 %v776
        %v1471 = vunpack.c.l.b16 %v777
        %v1472 = vunpack.c.l.b16 %v779
        %v1473 = vunpack.c.l.b16 %v780
        %v1474 = vunpack.c.l.b16 %v782
        %v1475 = vunpack.c.l.b16 %v783
        %v1476 = vpack.c.b16 %v1445, %v1444
        %v1477 = vpack.c.b16 %v1447, %v1446
        %v1478 = vpack.c.b16 %v1449, %v1448
        %v1479 = vpack.c.b16 %v1451, %v1450
        %v1480 = vpack.c.b16 %v1453, %v1452
        %v1481 = vpack.c.b16 %v1455, %v1454
        %v1482 = vpack.c.b16 %v1457, %v1456
        %v1483 = vpack.c.b16 %v1459, %v1458
        %v1484 = vpack.c.b16 %v1461, %v1460
        %v1485 = vpack.c.b16 %v1463, %v1462
        %v1486 = vpack.c.b16 %v1465, %v1464
        %v1487 = vpack.c.b16 %v1467, %v1466
        %v1488 = vpack.c.b16 %v1469, %v1468
        %v1489 = vpack.c.b16 %v1471, %v1470
        %v1490 = vpack.c.b16 %v1473, %v1472
        %v1491 = vpack.c.b16 %v1475, %v1474
        %v1524 = vunpack.c.l.b16 %v791
        %v1525 = vunpack.c.l.b16 %v792
        %v1526 = vunpack.c.l.b16 %v793
        %v1527 = vunpack.c.l.b16 %v794
        %v1528 = vunpack.c.l.b16 %v795
        %v1529 = vunpack.c.l.b16 %v796
        %v1530 = vunpack.c.l.b16 %v797
        %v1531 = vunpack.c.l.b16 %v798
        %v1532 = vunpack.c.l.b16 %v799
        %v1533 = vunpack.c.l.b16 %v800
        %v1534 = vunpack.c.l.b16 %v801
        %v1535 = vunpack.c.l.b16 %v802
        %v1536 = vunpack.c.l.b16 %v803
        %v1537 = vunpack.c.l.b16 %v804
        %v1538 = vunpack.c.l.b16 %v805
        %v1539 = vunpack.c.l.b16 %v806
        %v1540 = vpack.c.b16 %v1525, %v1524
        %v1541 = vpack.c.b16 %v1527, %v1526
        %v1542 = vpack.c.b16 %v1529, %v1528
        %v1543 = vpack.c.b16 %v1531, %v1530
        %v1544 = vpack.c.b16 %v1533, %v1532
        %v1545 = vpack.c.b16 %v1535, %v1534
        %v1546 = vpack.c.b16 %v1537, %v1536
        %v1547 = vpack.c.b16 %v1539, %v1538
        %1556 = vmatpush.bf16.msra.mxu0 %v1547
        %1557 = vmatpush.bf16.msra.mxu0 %v1546
        %1558 = vmatpush.bf16.msra.mxu0 %v1545
        %1559 = vmatpush.bf16.msra.mxu0 %v1544
        %1560 = vmatpush.bf16.msra.mxu0 %v1543
        %1561 = vmatpush.bf16.msra.mxu0 %v1542
        %1562 = vmatpush.bf16.msra.mxu0 %v1541
        %1563 = vmatpush.bf16.msra.mxu0 %v1540
        %1564 = vmatmul.bf16.gmra.mxu0 %v1476
        %v1565 = vpop.f32.mrf.mxu0
        %v1566 = vadd.f32 %v1333, %v1565
        %v1567 = vpop.f32.mrf.mxu0
        %v1568 = vadd.f32 %v1335, %v1567
        %1569 = vmatmul.bf16.gmra.mxu0 %v1477
        %v1570 = vpop.f32.mrf.mxu0
        %v1571 = vadd.f32 %v1338, %v1570
        %v1572 = vpop.f32.mrf.mxu0
        %v1573 = vadd.f32 %v1340, %v1572
        %1574 = vmatmul.bf16.gmra.mxu0 %v1478
        %v1575 = vpop.f32.mrf.mxu0
        %v1576 = vadd.f32 %v1343, %v1575
        %v1577 = vpop.f32.mrf.mxu0
        %v1578 = vadd.f32 %v1345, %v1577
        %1579 = vmatmul.bf16.gmra.mxu0 %v1479
        %v1580 = vpop.f32.mrf.mxu0
        %v1581 = vadd.f32 %v1348, %v1580
        %v1582 = vpop.f32.mrf.mxu0
        %v1583 = vadd.f32 %v1350, %v1582
        %1584 = vmatmul.bf16.gmra.mxu0 %v1480
        %v1585 = vpop.f32.mrf.mxu0
        %v1586 = vadd.f32 %v1353, %v1585
        %v1587 = vpop.f32.mrf.mxu0
        %v1588 = vadd.f32 %v1355, %v1587
        %1589 = vmatmul.bf16.gmra.mxu0 %v1481
        %v1590 = vpop.f32.mrf.mxu0
        %v1591 = vadd.f32 %v1358, %v1590
        %v1592 = vpop.f32.mrf.mxu0
        %v1593 = vadd.f32 %v1360, %v1592
        %1594 = vmatmul.bf16.gmra.mxu0 %v1482
        %v1595 = vpop.f32.mrf.mxu0
        %v1596 = vadd.f32 %v1363, %v1595
        %v1597 = vpop.f32.mrf.mxu0
        %v1598 = vadd.f32 %v1365, %v1597
        %1599 = vmatmul.bf16.gmra.mxu0 %v1483
        %v1600 = vpop.f32.mrf.mxu0
        %v1601 = vadd.f32 %v1368, %v1600
        %v1602 = vpop.f32.mrf.mxu0
        %v1603 = vadd.f32 %v1370, %v1602
        %1604 = vmatmul.bf16.gmra.mxu0 %v1484
        %v1605 = vpop.f32.mrf.mxu0
        %v1606 = vadd.f32 %v1373, %v1605
        %v1607 = vpop.f32.mrf.mxu0
        %v1608 = vadd.f32 %v1375, %v1607
        %1609 = vmatmul.bf16.gmra.mxu0 %v1485
        %v1610 = vpop.f32.mrf.mxu0
        %v1611 = vadd.f32 %v1378, %v1610
        %v1612 = vpop.f32.mrf.mxu0
        %v1613 = vadd.f32 %v1380, %v1612
        %1614 = vmatmul.bf16.gmra.mxu0 %v1486
        %v1615 = vpop.f32.mrf.mxu0
        %v1616 = vadd.f32 %v1383, %v1615
        %v1617 = vpop.f32.mrf.mxu0
        %v1618 = vadd.f32 %v1385, %v1617
        %1619 = vmatmul.bf16.gmra.mxu0 %v1487
        %v1620 = vpop.f32.mrf.mxu0
        %v1621 = vadd.f32 %v1388, %v1620
        %v1622 = vpop.f32.mrf.mxu0
        %v1623 = vadd.f32 %v1390, %v1622
        %1624 = vmatmul.bf16.gmra.mxu0 %v1488
        %v1625 = vpop.f32.mrf.mxu0
        %v1626 = vadd.f32 %v1393, %v1625
        %v1627 = vpop.f32.mrf.mxu0
        %v1628 = vadd.f32 %v1395, %v1627
        %1629 = vmatmul.bf16.gmra.mxu0 %v1489
        %v1630 = vpop.f32.mrf.mxu0
        %v1631 = vadd.f32 %v1398, %v1630
        %v1632 = vpop.f32.mrf.mxu0
        %v1633 = vadd.f32 %v1400, %v1632
        %1634 = vmatmul.bf16.gmra.mxu0 %v1490
        %v1635 = vpop.f32.mrf.mxu0
        %v1636 = vadd.f32 %v1403, %v1635
        %v1637 = vpop.f32.mrf.mxu0
        %v1638 = vadd.f32 %v1405, %v1637
        %1639 = vmatmul.bf16.gmra.mxu0 %v1491
        %v1640 = vpop.f32.mrf.mxu0
        %v1641 = vadd.f32 %v1408, %v1640
        %v1642 = vpop.f32.mrf.mxu0
        %v1643 = vadd.f32 %v1410, %v1642
        %1644 = vdwg.mxu0
        %vm1661 = vcmask 1042432
        %vm1662 = vcmask 1046532
        %vm1663 = vmor %vm1661, %vm1662
        %v1664 = vrot.slane %v737, 5
        %v1665 = vrot.slane %v1664, 4
        %v1666 = vrot.slane %v738, 5
        %v1667 = vsel %vm1663, %v1665, %v1666
        %v1668 = vrot.slane %v1666, 4
        %v1669 = vrot.slane %v739, 5
        %v1670 = vsel %vm1663, %v1668, %v1669
        %v1671 = vrot.slane %v740, 5
        %v1672 = vrot.slane %v1671, 4
        %v1673 = vrot.slane %v741, 5
        %v1674 = vsel %vm1663, %v1672, %v1673
        %v1675 = vrot.slane %v1673, 4
        %v1676 = vrot.slane %v742, 5
        %v1677 = vsel %vm1663, %v1675, %v1676
        %v1678 = vrot.slane %v743, 5
        %v1679 = vrot.slane %v1678, 4
        %v1680 = vrot.slane %v744, 5
        %v1681 = vsel %vm1663, %v1679, %v1680
        %v1682 = vrot.slane %v1680, 4
        %v1683 = vrot.slane %v745, 5
        %v1684 = vsel %vm1663, %v1682, %v1683
        %v1685 = vrot.slane %v746, 5
        %v1686 = vrot.slane %v1685, 4
        %v1687 = vrot.slane %v747, 5
        %v1688 = vsel %vm1663, %v1686, %v1687
        %v1689 = vrot.slane %v1687, 4
        %v1690 = vrot.slane %v748, 5
        %v1691 = vsel %vm1663, %v1689, %v1690
        %v1692 = vrot.slane %v749, 5
        %v1693 = vrot.slane %v1692, 4
        %v1694 = vrot.slane %v750, 5
        %v1695 = vsel %vm1663, %v1693, %v1694
        %v1696 = vrot.slane %v1694, 4
        %v1697 = vrot.slane %v751, 5
        %v1698 = vsel %vm1663, %v1696, %v1697
        %v1699 = vrot.slane %v752, 5
        %v1700 = vrot.slane %v1699, 4
        %v1701 = vrot.slane %v753, 5
        %v1702 = vsel %vm1663, %v1700, %v1701
        %v1703 = vrot.slane %v1701, 4
        %v1704 = vrot.slane %v754, 5
        %v1705 = vsel %vm1663, %v1703, %v1704
        %v1706 = vrot.slane %v755, 5
        %v1707 = vrot.slane %v1706, 4
        %v1708 = vrot.slane %v756, 5
        %v1709 = vsel %vm1663, %v1707, %v1708
        %v1710 = vrot.slane %v1708, 4
        %v1711 = vrot.slane %v757, 5
        %v1712 = vsel %vm1663, %v1710, %v1711
        %v1713 = vrot.slane %v758, 5
        %v1714 = vrot.slane %v1713, 4
        %v1715 = vrot.slane %v759, 5
        %v1716 = vsel %vm1663, %v1714, %v1715
        %v1717 = vrot.slane %v1715, 4
        %v1718 = vrot.slane %v760, 5
        %v1719 = vsel %vm1663, %v1717, %v1718
        %v1720 = vrot.slane %v761, 5
        %v1721 = vrot.slane %v1720, 4
        %v1722 = vrot.slane %v762, 5
        %v1723 = vsel %vm1663, %v1721, %v1722
        %v1724 = vrot.slane %v1722, 4
        %v1725 = vrot.slane %v763, 5
        %v1726 = vsel %vm1663, %v1724, %v1725
        %v1727 = vrot.slane %v764, 5
        %v1728 = vrot.slane %v1727, 4
        %v1729 = vrot.slane %v765, 5
        %v1730 = vsel %vm1663, %v1728, %v1729
        %v1731 = vrot.slane %v1729, 4
        %v1732 = vrot.slane %v766, 5
        %v1733 = vsel %vm1663, %v1731, %v1732
        %v1734 = vrot.slane %v767, 5
        %v1735 = vrot.slane %v1734, 4
        %v1736 = vrot.slane %v768, 5
        %v1737 = vsel %vm1663, %v1735, %v1736
        %v1738 = vrot.slane %v1736, 4
        %v1739 = vrot.slane %v769, 5
        %v1740 = vsel %vm1663, %v1738, %v1739
        %v1741 = vrot.slane %v770, 5
        %v1742 = vrot.slane %v1741, 4
        %v1743 = vrot.slane %v771, 5
        %v1744 = vsel %vm1663, %v1742, %v1743
        %v1745 = vrot.slane %v1743, 4
        %v1746 = vrot.slane %v772, 5
        %v1747 = vsel %vm1663, %v1745, %v1746
        %v1748 = vrot.slane %v773, 5
        %v1749 = vrot.slane %v1748, 4
        %v1750 = vrot.slane %v774, 5
        %v1751 = vsel %vm1663, %v1749, %v1750
        %v1752 = vrot.slane %v1750, 4
        %v1753 = vrot.slane %v775, 5
        %v1754 = vsel %vm1663, %v1752, %v1753
        %v1755 = vrot.slane %v776, 5
        %v1756 = vrot.slane %v1755, 4
        %v1757 = vrot.slane %v777, 5
        %v1758 = vsel %vm1663, %v1756, %v1757
        %v1759 = vrot.slane %v1757, 4
        %v1760 = vrot.slane %v778, 5
        %v1761 = vsel %vm1663, %v1759, %v1760
        %v1762 = vrot.slane %v779, 5
        %v1763 = vrot.slane %v1762, 4
        %v1764 = vrot.slane %v780, 5
        %v1765 = vsel %vm1663, %v1763, %v1764
        %v1766 = vrot.slane %v1764, 4
        %v1767 = vrot.slane %v781, 5
        %v1768 = vsel %vm1663, %v1766, %v1767
        %v1769 = vrot.slane %v782, 5
        %v1770 = vrot.slane %v1769, 4
        %v1771 = vrot.slane %v783, 5
        %v1772 = vsel %vm1663, %v1770, %v1771
        %v1773 = vrot.slane %v1771, 4
        %v1774 = vrot.slane %v784, 5
        %v1775 = vsel %vm1663, %v1773, %v1774
        %s1776 = scalar_lea.vmem [#allocation6], 128
        %v1777 = vld [vmem:[%s1776] sm:$0xf]
        %v1778 = vld [vmem:[%s1776 + $0x4] sm:$0xf]
        %v1779 = vld [vmem:[%s1776 + $0x8] sm:$0xf]
        %v1780 = vld [vmem:[%s1776 + $0xc] sm:$0xf]
        %v1781 = vld [vmem:[%s1776 + $0x10] sm:$0xf]
        %v1782 = vld [vmem:[%s1776 + $0x14] sm:$0xf]
        %v1783 = vld [vmem:[%s1776 + $0x18] sm:$0xf]
        %v1784 = vld [vmem:[%s1776 + $0x1c] sm:$0xf]
        %v1785 = vld [vmem:[%s1776 + $0x20] sm:$0xf]
        %v1786 = vld [vmem:[%s1776 + $0x24] sm:$0xf]
        %v1787 = vld [vmem:[%s1776 + $0x28] sm:$0xf]
        %v1788 = vld [vmem:[%s1776 + $0x2c] sm:$0xf]
        %v1789 = vld [vmem:[%s1776 + $0x30] sm:$0xf]
        %v1790 = vld [vmem:[%s1776 + $0x34] sm:$0xf]
        %v1791 = vld [vmem:[%s1776 + $0x38] sm:$0xf]
        %v1792 = vld [vmem:[%s1776 + $0x3c] sm:$0xf]
        %v1793 = vunpack.c.l.b16 %v1667
        %v1794 = vunpack.c.l.b16 %v1670
        %v1795 = vunpack.c.l.b16 %v1674
        %v1796 = vunpack.c.l.b16 %v1677
        %v1797 = vunpack.c.l.b16 %v1681
        %v1798 = vunpack.c.l.b16 %v1684
        %v1799 = vunpack.c.l.b16 %v1688
        %v1800 = vunpack.c.l.b16 %v1691
        %v1801 = vunpack.c.l.b16 %v1695
        %v1802 = vunpack.c.l.b16 %v1698
        %v1803 = vunpack.c.l.b16 %v1702
        %v1804 = vunpack.c.l.b16 %v1705
        %v1805 = vunpack.c.l.b16 %v1709
        %v1806 = vunpack.c.l.b16 %v1712
        %v1807 = vunpack.c.l.b16 %v1716
        %v1808 = vunpack.c.l.b16 %v1719
        %v1809 = vunpack.c.l.b16 %v1723
        %v1810 = vunpack.c.l.b16 %v1726
        %v1811 = vunpack.c.l.b16 %v1730
        %v1812 = vunpack.c.l.b16 %v1733
        %v1813 = vunpack.c.l.b16 %v1737
        %v1814 = vunpack.c.l.b16 %v1740
        %v1815 = vunpack.c.l.b16 %v1744
        %v1816 = vunpack.c.l.b16 %v1747
        %v1817 = vunpack.c.l.b16 %v1751
        %v1818 = vunpack.c.l.b16 %v1754
        %v1819 = vunpack.c.l.b16 %v1758
        %v1820 = vunpack.c.l.b16 %v1761
        %v1821 = vunpack.c.l.b16 %v1765
        %v1822 = vunpack.c.l.b16 %v1768
        %v1823 = vunpack.c.l.b16 %v1772
        %v1824 = vunpack.c.l.b16 %v1775
        %v1825 = vpack.c.b16 %v1794, %v1793
        %v1826 = vpack.c.b16 %v1796, %v1795
        %v1827 = vpack.c.b16 %v1798, %v1797
        %v1828 = vpack.c.b16 %v1800, %v1799
        %v1829 = vpack.c.b16 %v1802, %v1801
        %v1830 = vpack.c.b16 %v1804, %v1803
        %v1831 = vpack.c.b16 %v1806, %v1805
        %v1832 = vpack.c.b16 %v1808, %v1807
        %v1833 = vpack.c.b16 %v1810, %v1809
        %v1834 = vpack.c.b16 %v1812, %v1811
        %v1835 = vpack.c.b16 %v1814, %v1813
        %v1836 = vpack.c.b16 %v1816, %v1815
        %v1837 = vpack.c.b16 %v1818, %v1817
        %v1838 = vpack.c.b16 %v1820, %v1819
        %v1839 = vpack.c.b16 %v1822, %v1821
        %v1840 = vpack.c.b16 %v1824, %v1823
        %v1873 = vunpack.c.l.b16 %v1777
        %v1874 = vunpack.c.l.b16 %v1778
        %v1875 = vunpack.c.l.b16 %v1779
        %v1876 = vunpack.c.l.b16 %v1780
        %v1877 = vunpack.c.l.b16 %v1781
        %v1878 = vunpack.c.l.b16 %v1782
        %v1879 = vunpack.c.l.b16 %v1783
        %v1880 = vunpack.c.l.b16 %v1784
        %v1881 = vunpack.c.l.b16 %v1785
        %v1882 = vunpack.c.l.b16 %v1786
        %v1883 = vunpack.c.l.b16 %v1787
        %v1884 = vunpack.c.l.b16 %v1788
        %v1885 = vunpack.c.l.b16 %v1789
        %v1886 = vunpack.c.l.b16 %v1790
        %v1887 = vunpack.c.l.b16 %v1791
        %v1888 = vunpack.c.l.b16 %v1792
        %v1889 = vpack.c.b16 %v1874, %v1873
        %v1890 = vpack.c.b16 %v1876, %v1875
        %v1891 = vpack.c.b16 %v1878, %v1877
        %v1892 = vpack.c.b16 %v1880, %v1879
        %v1893 = vpack.c.b16 %v1882, %v1881
        %v1894 = vpack.c.b16 %v1884, %v1883
        %v1895 = vpack.c.b16 %v1886, %v1885
        %v1896 = vpack.c.b16 %v1888, %v1887
        %1905 = vmatpush.bf16.msra.mxu0 %v1896
        %1906 = vmatpush.bf16.msra.mxu0 %v1895
        %1907 = vmatpush.bf16.msra.mxu0 %v1894
        %1908 = vmatpush.bf16.msra.mxu0 %v1893
        %1909 = vmatpush.bf16.msra.mxu0 %v1892
        %1910 = vmatpush.bf16.msra.mxu0 %v1891
        %1911 = vmatpush.bf16.msra.mxu0 %v1890
        %1912 = vmatpush.bf16.msra.mxu0 %v1889
        %1913 = vmatmul.bf16.gmra.mxu0 %v1825
        %v1914 = vpop.f32.mrf.mxu0
        %v1915 = vadd.f32 0.0, %v1914
        %v1916 = vpop.f32.mrf.mxu0
        %v1917 = vadd.f32 0.0, %v1916
        %1918 = vmatmul.bf16.gmra.mxu0 %v1826
        %v1919 = vpop.f32.mrf.mxu0
        %v1920 = vadd.f32 0.0, %v1919
        %v1921 = vpop.f32.mrf.mxu0
        %v1922 = vadd.f32 0.0, %v1921
        %1923 = vmatmul.bf16.gmra.mxu0 %v1827
        %v1924 = vpop.f32.mrf.mxu0
        %v1925 = vadd.f32 0.0, %v1924
        %v1926 = vpop.f32.mrf.mxu0
        %v1927 = vadd.f32 0.0, %v1926
        %1928 = vmatmul.bf16.gmra.mxu0 %v1828
        %v1929 = vpop.f32.mrf.mxu0
        %v1930 = vadd.f32 0.0, %v1929
        %v1931 = vpop.f32.mrf.mxu0
        %v1932 = vadd.f32 0.0, %v1931
        %1933 = vmatmul.bf16.gmra.mxu0 %v1829
        %v1934 = vpop.f32.mrf.mxu0
        %v1935 = vadd.f32 0.0, %v1934
        %v1936 = vpop.f32.mrf.mxu0
        %v1937 = vadd.f32 0.0, %v1936
        %1938 = vmatmul.bf16.gmra.mxu0 %v1830
        %v1939 = vpop.f32.mrf.mxu0
        %v1940 = vadd.f32 0.0, %v1939
        %v1941 = vpop.f32.mrf.mxu0
        %v1942 = vadd.f32 0.0, %v1941
        %1943 = vmatmul.bf16.gmra.mxu0 %v1831
        %v1944 = vpop.f32.mrf.mxu0
        %v1945 = vadd.f32 0.0, %v1944
        %v1946 = vpop.f32.mrf.mxu0
        %v1947 = vadd.f32 0.0, %v1946
        %1948 = vmatmul.bf16.gmra.mxu0 %v1832
        %v1949 = vpop.f32.mrf.mxu0
        %v1950 = vadd.f32 0.0, %v1949
        %v1951 = vpop.f32.mrf.mxu0
        %v1952 = vadd.f32 0.0, %v1951
        %1953 = vmatmul.bf16.gmra.mxu0 %v1833
        %v1954 = vpop.f32.mrf.mxu0
        %v1955 = vadd.f32 0.0, %v1954
        %v1956 = vpop.f32.mrf.mxu0
        %v1957 = vadd.f32 0.0, %v1956
        %1958 = vmatmul.bf16.gmra.mxu0 %v1834
        %v1959 = vpop.f32.mrf.mxu0
        %v1960 = vadd.f32 0.0, %v1959
        %v1961 = vpop.f32.mrf.mxu0
        %v1962 = vadd.f32 0.0, %v1961
        %1963 = vmatmul.bf16.gmra.mxu0 %v1835
        %v1964 = vpop.f32.mrf.mxu0
        %v1965 = vadd.f32 0.0, %v1964
        %v1966 = vpop.f32.mrf.mxu0
        %v1967 = vadd.f32 0.0, %v1966
        %1968 = vmatmul.bf16.gmra.mxu0 %v1836
        %v1969 = vpop.f32.mrf.mxu0
        %v1970 = vadd.f32 0.0, %v1969
        %v1971 = vpop.f32.mrf.mxu0
        %v1972 = vadd.f32 0.0, %v1971
        %1973 = vmatmul.bf16.gmra.mxu0 %v1837
        %v1974 = vpop.f32.mrf.mxu0
        %v1975 = vadd.f32 0.0, %v1974
        %v1976 = vpop.f32.mrf.mxu0
        %v1977 = vadd.f32 0.0, %v1976
        %1978 = vmatmul.bf16.gmra.mxu0 %v1838
        %v1979 = vpop.f32.mrf.mxu0
        %v1980 = vadd.f32 0.0, %v1979
        %v1981 = vpop.f32.mrf.mxu0
        %v1982 = vadd.f32 0.0, %v1981
        %1983 = vmatmul.bf16.gmra.mxu0 %v1839
        %v1984 = vpop.f32.mrf.mxu0
        %v1985 = vadd.f32 0.0, %v1984
        %v1986 = vpop.f32.mrf.mxu0
        %v1987 = vadd.f32 0.0, %v1986
        %1988 = vmatmul.bf16.gmra.mxu0 %v1840
        %v1989 = vpop.f32.mrf.mxu0
        %v1990 = vadd.f32 0.0, %v1989
        %v1991 = vpop.f32.mrf.mxu0
        %v1992 = vadd.f32 0.0, %v1991
        %1993 = vdwg.mxu0
        %v1994 = vadd.f32 %v1566, %v1915
        %v1995 = vadd.f32 %v1568, %v1917
        %v1996 = vadd.f32 %v1571, %v1920
        %v1997 = vadd.f32 %v1573, %v1922
        %v1998 = vadd.f32 %v1576, %v1925
        %v1999 = vadd.f32 %v1578, %v1927
        %v2000 = vadd.f32 %v1581, %v1930
        %v2001 = vadd.f32 %v1583, %v1932
        %v2002 = vadd.f32 %v1586, %v1935
        %v2003 = vadd.f32 %v1588, %v1937
        %v2004 = vadd.f32 %v1591, %v1940
        %v2005 = vadd.f32 %v1593, %v1942
        %v2006 = vadd.f32 %v1596, %v1945
        %v2007 = vadd.f32 %v1598, %v1947
        %v2008 = vadd.f32 %v1601, %v1950
        %v2009 = vadd.f32 %v1603, %v1952
        %v2010 = vadd.f32 %v1606, %v1955
        %v2011 = vadd.f32 %v1608, %v1957
        %v2012 = vadd.f32 %v1611, %v1960
        %v2013 = vadd.f32 %v1613, %v1962
        %v2014 = vadd.f32 %v1616, %v1965
        %v2015 = vadd.f32 %v1618, %v1967
        %v2016 = vadd.f32 %v1621, %v1970
        %v2017 = vadd.f32 %v1623, %v1972
        %v2018 = vadd.f32 %v1626, %v1975
        %v2019 = vadd.f32 %v1628, %v1977
        %v2020 = vadd.f32 %v1631, %v1980
        %v2021 = vadd.f32 %v1633, %v1982
        %v2022 = vadd.f32 %v1636, %v1985
        %v2023 = vadd.f32 %v1638, %v1987
        %v2024 = vadd.f32 %v1641, %v1990
        %v2025 = vadd.f32 %v1643, %v1992
        %s2026 = scalar_lea.vmem [#allocation6], 192
        %v2027 = vld [vmem:[%s2026] sm:$0xf]
        %v2028 = vld [vmem:[%s2026 + $0x4] sm:$0xf]
        %v2029 = vld [vmem:[%s2026 + $0x8] sm:$0xf]
        %v2030 = vld [vmem:[%s2026 + $0xc] sm:$0xf]
        %v2031 = vld [vmem:[%s2026 + $0x10] sm:$0xf]
        %v2032 = vld [vmem:[%s2026 + $0x14] sm:$0xf]
        %v2033 = vld [vmem:[%s2026 + $0x18] sm:$0xf]
        %v2034 = vld [vmem:[%s2026 + $0x1c] sm:$0xf]
        %v2035 = vld [vmem:[%s2026 + $0x20] sm:$0xf]
        %v2036 = vld [vmem:[%s2026 + $0x24] sm:$0xf]
        %v2037 = vld [vmem:[%s2026 + $0x28] sm:$0xf]
        %v2038 = vld [vmem:[%s2026 + $0x2c] sm:$0xf]
        %v2039 = vld [vmem:[%s2026 + $0x30] sm:$0xf]
        %v2040 = vld [vmem:[%s2026 + $0x34] sm:$0xf]
        %v2041 = vld [vmem:[%s2026 + $0x38] sm:$0xf]
        %v2042 = vld [vmem:[%s2026 + $0x3c] sm:$0xf]
        %v2045 = vunpack.c.l.b16 %v785
        %v2046 = vunpack.c.l.b16 %v786
        %v2047 = vpack.c.b16 %v2046, %v2045
        %v2065 = vunpack.c.l.b16 %v2027
        %v2066 = vunpack.c.l.b16 %v2028
        %v2067 = vunpack.c.l.b16 %v2029
        %v2068 = vunpack.c.l.b16 %v2030
        %v2069 = vunpack.c.l.b16 %v2031
        %v2070 = vunpack.c.l.b16 %v2032
        %v2071 = vunpack.c.l.b16 %v2033
        %v2072 = vunpack.c.l.b16 %v2034
        %v2073 = vunpack.c.l.b16 %v2035
        %v2074 = vunpack.c.l.b16 %v2036
        %v2075 = vunpack.c.l.b16 %v2037
        %v2076 = vunpack.c.l.b16 %v2038
        %v2077 = vunpack.c.l.b16 %v2039
        %v2078 = vunpack.c.l.b16 %v2040
        %v2079 = vunpack.c.l.b16 %v2041
        %v2080 = vunpack.c.l.b16 %v2042
        %v2081 = vpack.c.b16 %v2066, %v2065
        %v2082 = vpack.c.b16 %v2068, %v2067
        %v2083 = vpack.c.b16 %v2070, %v2069
        %v2084 = vpack.c.b16 %v2072, %v2071
        %v2085 = vpack.c.b16 %v2074, %v2073
        %v2086 = vpack.c.b16 %v2076, %v2075
        %v2087 = vpack.c.b16 %v2078, %v2077
        %v2088 = vpack.c.b16 %v2080, %v2079
        %2097 = vmatpush.bf16.msra.mxu0 %v2088
        %2098 = vmatpush.bf16.msra.mxu0 %v2087
        %2099 = vmatpush.bf16.msra.mxu0 %v2086
        %2100 = vmatpush.bf16.msra.mxu0 %v2085
        %2101 = vmatpush.bf16.msra.mxu0 %v2084
        %2102 = vmatpush.bf16.msra.mxu0 %v2083
        %2103 = vmatpush.bf16.msra.mxu0 %v2082
        %2104 = vmatpush.bf16.msra.mxu0 %v2081
        %2105 = vmatmul.bf16.gmra.mxu0 %v1477
        %v2106 = vpop.f32.mrf.mxu0
        %v2107 = vadd.f32 0.0, %v2106
        %v2108 = vpop.f32.mrf.mxu0
        %v2109 = vadd.f32 0.0, %v2108
        %2110 = vmatmul.bf16.gmra.mxu0 %v1478
        %v2111 = vpop.f32.mrf.mxu0
        %v2112 = vadd.f32 0.0, %v2111
        %v2113 = vpop.f32.mrf.mxu0
        %v2114 = vadd.f32 0.0, %v2113
        %2115 = vmatmul.bf16.gmra.mxu0 %v1479
        %v2116 = vpop.f32.mrf.mxu0
        %v2117 = vadd.f32 0.0, %v2116
        %v2118 = vpop.f32.mrf.mxu0
        %v2119 = vadd.f32 0.0, %v2118
        %2120 = vmatmul.bf16.gmra.mxu0 %v1480
        %v2121 = vpop.f32.mrf.mxu0
        %v2122 = vadd.f32 0.0, %v2121
        %v2123 = vpop.f32.mrf.mxu0
        %v2124 = vadd.f32 0.0, %v2123
        %2125 = vmatmul.bf16.gmra.mxu0 %v1481
        %v2126 = vpop.f32.mrf.mxu0
        %v2127 = vadd.f32 0.0, %v2126
        %v2128 = vpop.f32.mrf.mxu0
        %v2129 = vadd.f32 0.0, %v2128
        %2130 = vmatmul.bf16.gmra.mxu0 %v1482
        %v2131 = vpop.f32.mrf.mxu0
        %v2132 = vadd.f32 0.0, %v2131
        %v2133 = vpop.f32.mrf.mxu0
        %v2134 = vadd.f32 0.0, %v2133
        %2135 = vmatmul.bf16.gmra.mxu0 %v1483
        %v2136 = vpop.f32.mrf.mxu0
        %v2137 = vadd.f32 0.0, %v2136
        %v2138 = vpop.f32.mrf.mxu0
        %v2139 = vadd.f32 0.0, %v2138
        %2140 = vmatmul.bf16.gmra.mxu0 %v1484
        %v2141 = vpop.f32.mrf.mxu0
        %v2142 = vadd.f32 0.0, %v2141
        %v2143 = vpop.f32.mrf.mxu0
        %v2144 = vadd.f32 0.0, %v2143
        %2145 = vmatmul.bf16.gmra.mxu0 %v1485
        %v2146 = vpop.f32.mrf.mxu0
        %v2147 = vadd.f32 0.0, %v2146
        %v2148 = vpop.f32.mrf.mxu0
        %v2149 = vadd.f32 0.0, %v2148
        %2150 = vmatmul.bf16.gmra.mxu0 %v1486
        %v2151 = vpop.f32.mrf.mxu0
        %v2152 = vadd.f32 0.0, %v2151
        %v2153 = vpop.f32.mrf.mxu0
        %v2154 = vadd.f32 0.0, %v2153
        %2155 = vmatmul.bf16.gmra.mxu0 %v1487
        %v2156 = vpop.f32.mrf.mxu0
        %v2157 = vadd.f32 0.0, %v2156
        %v2158 = vpop.f32.mrf.mxu0
        %v2159 = vadd.f32 0.0, %v2158
        %2160 = vmatmul.bf16.gmra.mxu0 %v1488
        %v2161 = vpop.f32.mrf.mxu0
        %v2162 = vadd.f32 0.0, %v2161
        %v2163 = vpop.f32.mrf.mxu0
        %v2164 = vadd.f32 0.0, %v2163
        %2165 = vmatmul.bf16.gmra.mxu0 %v1489
        %v2166 = vpop.f32.mrf.mxu0
        %v2167 = vadd.f32 0.0, %v2166
        %v2168 = vpop.f32.mrf.mxu0
        %v2169 = vadd.f32 0.0, %v2168
        %2170 = vmatmul.bf16.gmra.mxu0 %v1490
        %v2171 = vpop.f32.mrf.mxu0
        %v2172 = vadd.f32 0.0, %v2171
        %v2173 = vpop.f32.mrf.mxu0
        %v2174 = vadd.f32 0.0, %v2173
        %2175 = vmatmul.bf16.gmra.mxu0 %v1491
        %v2176 = vpop.f32.mrf.mxu0
        %v2177 = vadd.f32 0.0, %v2176
        %v2178 = vpop.f32.mrf.mxu0
        %v2179 = vadd.f32 0.0, %v2178
        %2180 = vmatmul.bf16.gmra.mxu0 %v2047
        %v2181 = vpop.f32.mrf.mxu0
        %v2182 = vadd.f32 0.0, %v2181
        %v2183 = vpop.f32.mrf.mxu0
        %v2184 = vadd.f32 0.0, %v2183
        %2185 = vdwg.mxu0
        %v2186 = vadd.f32 %v1994, %v2107
        %v2187 = vadd.f32 %v1995, %v2109
        %v2188 = vadd.f32 %v1996, %v2112
        %v2189 = vadd.f32 %v1997, %v2114
        %v2190 = vadd.f32 %v1998, %v2117
        %v2191 = vadd.f32 %v1999, %v2119
        %v2192 = vadd.f32 %v2000, %v2122
        %v2193 = vadd.f32 %v2001, %v2124
        %v2194 = vadd.f32 %v2002, %v2127
        %v2195 = vadd.f32 %v2003, %v2129
        %v2196 = vadd.f32 %v2004, %v2132
        %v2197 = vadd.f32 %v2005, %v2134
        %v2198 = vadd.f32 %v2006, %v2137
        %v2199 = vadd.f32 %v2007, %v2139
        %v2200 = vadd.f32 %v2008, %v2142
        %v2201 = vadd.f32 %v2009, %v2144
        %v2202 = vadd.f32 %v2010, %v2147
        %v2203 = vadd.f32 %v2011, %v2149
        %v2204 = vadd.f32 %v2012, %v2152
        %v2205 = vadd.f32 %v2013, %v2154
        %v2206 = vadd.f32 %v2014, %v2157
        %v2207 = vadd.f32 %v2015, %v2159
        %v2208 = vadd.f32 %v2016, %v2162
        %v2209 = vadd.f32 %v2017, %v2164
        %v2210 = vadd.f32 %v2018, %v2167
        %v2211 = vadd.f32 %v2019, %v2169
        %v2212 = vadd.f32 %v2020, %v2172
        %v2213 = vadd.f32 %v2021, %v2174
        %v2214 = vadd.f32 %v2022, %v2177
        %v2215 = vadd.f32 %v2023, %v2179
        %v2216 = vadd.f32 %v2024, %v2182
        %v2217 = vadd.f32 %v2025, %v2184
        %v2219 = vshrl.u32 %v785, 16
        %v2221 = vrot.slane %v2219, 4
        %v2222 = vshll.u32 %v785, 16
        %v2224 = vrot.slane %v2222, 5
        %v2225 = vor.u32 %v2221, %v2224
        %v2226 = vrot.slane %v2225, 4
        %v2228 = vshll.u32 %v786, 16
        %v2230 = vrot.slane %v2228, 5
        %v2231 = vsel %vm809, %v2226, %v2230
        %v2232 = vshrl.u32 %v786, 16
        %v2234 = vrot.slane %v2232, 4
        %v2235 = vor.u32 %v2234, %v2230
        %v2236 = vrot.slane %v2235, 4
        %v2238 = vshll.u32 %v787, 16
        %v2240 = vrot.slane %v2238, 5
        %v2241 = vsel %vm809, %v2236, %v2240
        %s2242 = scalar_lea.vmem [#allocation6], 256
        %v2243 = vld [vmem:[%s2242] sm:$0xf]
        %v2244 = vld [vmem:[%s2242 + $0x4] sm:$0xf]
        %v2245 = vld [vmem:[%s2242 + $0x8] sm:$0xf]
        %v2246 = vld [vmem:[%s2242 + $0xc] sm:$0xf]
        %v2247 = vld [vmem:[%s2242 + $0x10] sm:$0xf]
        %v2248 = vld [vmem:[%s2242 + $0x14] sm:$0xf]
        %v2249 = vld [vmem:[%s2242 + $0x18] sm:$0xf]
        %v2250 = vld [vmem:[%s2242 + $0x1c] sm:$0xf]
        %v2251 = vld [vmem:[%s2242 + $0x20] sm:$0xf]
        %v2252 = vld [vmem:[%s2242 + $0x24] sm:$0xf]
        %v2253 = vld [vmem:[%s2242 + $0x28] sm:$0xf]
        %v2254 = vld [vmem:[%s2242 + $0x2c] sm:$0xf]
        %v2255 = vld [vmem:[%s2242 + $0x30] sm:$0xf]
        %v2256 = vld [vmem:[%s2242 + $0x34] sm:$0xf]
        %v2257 = vld [vmem:[%s2242 + $0x38] sm:$0xf]
        %v2258 = vld [vmem:[%s2242 + $0x3c] sm:$0xf]
        %v2259 = vunpack.c.l.b16 %v2231
        %v2260 = vunpack.c.l.b16 %v2241
        %v2261 = vpack.c.b16 %v2260, %v2259
        %v2279 = vunpack.c.l.b16 %v2243
        %v2280 = vunpack.c.l.b16 %v2244
        %v2281 = vunpack.c.l.b16 %v2245
        %v2282 = vunpack.c.l.b16 %v2246
        %v2283 = vunpack.c.l.b16 %v2247
        %v2284 = vunpack.c.l.b16 %v2248
        %v2285 = vunpack.c.l.b16 %v2249
        %v2286 = vunpack.c.l.b16 %v2250
        %v2287 = vunpack.c.l.b16 %v2251
        %v2288 = vunpack.c.l.b16 %v2252
        %v2289 = vunpack.c.l.b16 %v2253
        %v2290 = vunpack.c.l.b16 %v2254
        %v2291 = vunpack.c.l.b16 %v2255
        %v2292 = vunpack.c.l.b16 %v2256
        %v2293 = vunpack.c.l.b16 %v2257
        %v2294 = vunpack.c.l.b16 %v2258
        %v2295 = vpack.c.b16 %v2280, %v2279
        %v2296 = vpack.c.b16 %v2282, %v2281
        %v2297 = vpack.c.b16 %v2284, %v2283
        %v2298 = vpack.c.b16 %v2286, %v2285
        %v2299 = vpack.c.b16 %v2288, %v2287
        %v2300 = vpack.c.b16 %v2290, %v2289
        %v2301 = vpack.c.b16 %v2292, %v2291
        %v2302 = vpack.c.b16 %v2294, %v2293
        %2311 = vmatpush.bf16.msra.mxu0 %v2302
        %2312 = vmatpush.bf16.msra.mxu0 %v2301
        %2313 = vmatpush.bf16.msra.mxu0 %v2300
        %2314 = vmatpush.bf16.msra.mxu0 %v2299
        %2315 = vmatpush.bf16.msra.mxu0 %v2298
        %2316 = vmatpush.bf16.msra.mxu0 %v2297
        %2317 = vmatpush.bf16.msra.mxu0 %v2296
        %2318 = vmatpush.bf16.msra.mxu0 %v2295
        %2319 = vmatmul.bf16.gmra.mxu0 %v1244
        %v2320 = vpop.f32.mrf.mxu0
        %v2321 = vadd.f32 0.0, %v2320
        %v2322 = vpop.f32.mrf.mxu0
        %v2323 = vadd.f32 0.0, %v2322
        %2324 = vmatmul.bf16.gmra.mxu0 %v1245
        %v2325 = vpop.f32.mrf.mxu0
        %v2326 = vadd.f32 0.0, %v2325
        %v2327 = vpop.f32.mrf.mxu0
        %v2328 = vadd.f32 0.0, %v2327
        %2329 = vmatmul.bf16.gmra.mxu0 %v1246
        %v2330 = vpop.f32.mrf.mxu0
        %v2331 = vadd.f32 0.0, %v2330
        %v2332 = vpop.f32.mrf.mxu0
        %v2333 = vadd.f32 0.0, %v2332
        %2334 = vmatmul.bf16.gmra.mxu0 %v1247
        %v2335 = vpop.f32.mrf.mxu0
        %v2336 = vadd.f32 0.0, %v2335
        %v2337 = vpop.f32.mrf.mxu0
        %v2338 = vadd.f32 0.0, %v2337
        %2339 = vmatmul.bf16.gmra.mxu0 %v1248
        %v2340 = vpop.f32.mrf.mxu0
        %v2341 = vadd.f32 0.0, %v2340
        %v2342 = vpop.f32.mrf.mxu0
        %v2343 = vadd.f32 0.0, %v2342
        %2344 = vmatmul.bf16.gmra.mxu0 %v1249
        %v2345 = vpop.f32.mrf.mxu0
        %v2346 = vadd.f32 0.0, %v2345
        %v2347 = vpop.f32.mrf.mxu0
        %v2348 = vadd.f32 0.0, %v2347
        %2349 = vmatmul.bf16.gmra.mxu0 %v1250
        %v2350 = vpop.f32.mrf.mxu0
        %v2351 = vadd.f32 0.0, %v2350
        %v2352 = vpop.f32.mrf.mxu0
        %v2353 = vadd.f32 0.0, %v2352
        %2354 = vmatmul.bf16.gmra.mxu0 %v1251
        %v2355 = vpop.f32.mrf.mxu0
        %v2356 = vadd.f32 0.0, %v2355
        %v2357 = vpop.f32.mrf.mxu0
        %v2358 = vadd.f32 0.0, %v2357
        %2359 = vmatmul.bf16.gmra.mxu0 %v1252
        %v2360 = vpop.f32.mrf.mxu0
        %v2361 = vadd.f32 0.0, %v2360
        %v2362 = vpop.f32.mrf.mxu0
        %v2363 = vadd.f32 0.0, %v2362
        %2364 = vmatmul.bf16.gmra.mxu0 %v1253
        %v2365 = vpop.f32.mrf.mxu0
        %v2366 = vadd.f32 0.0, %v2365
        %v2367 = vpop.f32.mrf.mxu0
        %v2368 = vadd.f32 0.0, %v2367
        %2369 = vmatmul.bf16.gmra.mxu0 %v1254
        %v2370 = vpop.f32.mrf.mxu0
        %v2371 = vadd.f32 0.0, %v2370
        %v2372 = vpop.f32.mrf.mxu0
        %v2373 = vadd.f32 0.0, %v2372
        %2374 = vmatmul.bf16.gmra.mxu0 %v1255
        %v2375 = vpop.f32.mrf.mxu0
        %v2376 = vadd.f32 0.0, %v2375
        %v2377 = vpop.f32.mrf.mxu0
        %v2378 = vadd.f32 0.0, %v2377
        %2379 = vmatmul.bf16.gmra.mxu0 %v1256
        %v2380 = vpop.f32.mrf.mxu0
        %v2381 = vadd.f32 0.0, %v2380
        %v2382 = vpop.f32.mrf.mxu0
        %v2383 = vadd.f32 0.0, %v2382
        %2384 = vmatmul.bf16.gmra.mxu0 %v1257
        %v2385 = vpop.f32.mrf.mxu0
        %v2386 = vadd.f32 0.0, %v2385
        %v2387 = vpop.f32.mrf.mxu0
        %v2388 = vadd.f32 0.0, %v2387
        %2389 = vmatmul.bf16.gmra.mxu0 %v1258
        %v2390 = vpop.f32.mrf.mxu0
        %v2391 = vadd.f32 0.0, %v2390
        %v2392 = vpop.f32.mrf.mxu0
        %v2393 = vadd.f32 0.0, %v2392
        %2394 = vmatmul.bf16.gmra.mxu0 %v2261
        %v2395 = vpop.f32.mrf.mxu0
        %v2396 = vadd.f32 0.0, %v2395
        %v2397 = vpop.f32.mrf.mxu0
        %v2398 = vadd.f32 0.0, %v2397
        %2399 = vdwg.mxu0
        %v2400 = vadd.f32 %v2186, %v2321
        %v2401 = vadd.f32 %v2187, %v2323
        %v2402 = vadd.f32 %v2188, %v2326
        %v2403 = vadd.f32 %v2189, %v2328
        %v2404 = vadd.f32 %v2190, %v2331
        %v2405 = vadd.f32 %v2191, %v2333
        %v2406 = vadd.f32 %v2192, %v2336
        %v2407 = vadd.f32 %v2193, %v2338
        %v2408 = vadd.f32 %v2194, %v2341
        %v2409 = vadd.f32 %v2195, %v2343
        %v2410 = vadd.f32 %v2196, %v2346
        %v2411 = vadd.f32 %v2197, %v2348
        %v2412 = vadd.f32 %v2198, %v2351
        %v2413 = vadd.f32 %v2199, %v2353
        %v2414 = vadd.f32 %v2200, %v2356
        %v2415 = vadd.f32 %v2201, %v2358
        %v2416 = vadd.f32 %v2202, %v2361
        %v2417 = vadd.f32 %v2203, %v2363
        %v2418 = vadd.f32 %v2204, %v2366
        %v2419 = vadd.f32 %v2205, %v2368
        %v2420 = vadd.f32 %v2206, %v2371
        %v2421 = vadd.f32 %v2207, %v2373
        %v2422 = vadd.f32 %v2208, %v2376
        %v2423 = vadd.f32 %v2209, %v2378
        %v2424 = vadd.f32 %v2210, %v2381
        %v2425 = vadd.f32 %v2211, %v2383
        %v2426 = vadd.f32 %v2212, %v2386
        %v2427 = vadd.f32 %v2213, %v2388
        %v2428 = vadd.f32 %v2214, %v2391
        %v2429 = vadd.f32 %v2215, %v2393
        %v2430 = vadd.f32 %v2216, %v2396
        %v2431 = vadd.f32 %v2217, %v2398
        %v2433 = vrot.slane %v785, 5
        %v2434 = vrot.slane %v2433, 4
        %v2435 = vrot.slane %v786, 5
        %v2436 = vsel %vm1663, %v2434, %v2435
        %v2437 = vrot.slane %v2435, 4
        %v2438 = vrot.slane %v787, 5
        %v2439 = vsel %vm1663, %v2437, %v2438
        %s2440 = scalar_lea.vmem [#allocation6], 320
        %v2441 = vld [vmem:[%s2440] sm:$0xf]
        %v2442 = vld [vmem:[%s2440 + $0x4] sm:$0xf]
        %v2443 = vld [vmem:[%s2440 + $0x8] sm:$0xf]
        %v2444 = vld [vmem:[%s2440 + $0xc] sm:$0xf]
        %v2445 = vld [vmem:[%s2440 + $0x10] sm:$0xf]
        %v2446 = vld [vmem:[%s2440 + $0x14] sm:$0xf]
        %v2447 = vld [vmem:[%s2440 + $0x18] sm:$0xf]
        %v2448 = vld [vmem:[%s2440 + $0x1c] sm:$0xf]
        %v2449 = vld [vmem:[%s2440 + $0x20] sm:$0xf]
        %v2450 = vld [vmem:[%s2440 + $0x24] sm:$0xf]
        %v2451 = vld [vmem:[%s2440 + $0x28] sm:$0xf]
        %v2452 = vld [vmem:[%s2440 + $0x2c] sm:$0xf]
        %v2453 = vld [vmem:[%s2440 + $0x30] sm:$0xf]
        %v2454 = vld [vmem:[%s2440 + $0x34] sm:$0xf]
        %v2455 = vld [vmem:[%s2440 + $0x38] sm:$0xf]
        %v2456 = vld [vmem:[%s2440 + $0x3c] sm:$0xf]
        %v2457 = vunpack.c.l.b16 %v2436
        %v2458 = vunpack.c.l.b16 %v2439
        %v2459 = vpack.c.b16 %v2458, %v2457
        %v2477 = vunpack.c.l.b16 %v2441
        %v2478 = vunpack.c.l.b16 %v2442
        %v2479 = vunpack.c.l.b16 %v2443
        %v2480 = vunpack.c.l.b16 %v2444
        %v2481 = vunpack.c.l.b16 %v2445
        %v2482 = vunpack.c.l.b16 %v2446
        %v2483 = vunpack.c.l.b16 %v2447
        %v2484 = vunpack.c.l.b16 %v2448
        %v2485 = vunpack.c.l.b16 %v2449
        %v2486 = vunpack.c.l.b16 %v2450
        %v2487 = vunpack.c.l.b16 %v2451
        %v2488 = vunpack.c.l.b16 %v2452
        %v2489 = vunpack.c.l.b16 %v2453
        %v2490 = vunpack.c.l.b16 %v2454
        %v2491 = vunpack.c.l.b16 %v2455
        %v2492 = vunpack.c.l.b16 %v2456
        %v2493 = vpack.c.b16 %v2478, %v2477
        %v2494 = vpack.c.b16 %v2480, %v2479
        %v2495 = vpack.c.b16 %v2482, %v2481
        %v2496 = vpack.c.b16 %v2484, %v2483
        %v2497 = vpack.c.b16 %v2486, %v2485
        %v2498 = vpack.c.b16 %v2488, %v2487
        %v2499 = vpack.c.b16 %v2490, %v2489
        %v2500 = vpack.c.b16 %v2492, %v2491
        %2509 = vmatpush.bf16.msra.mxu0 %v2500
        %2510 = vmatpush.bf16.msra.mxu0 %v2499
        %2511 = vmatpush.bf16.msra.mxu0 %v2498
        %2512 = vmatpush.bf16.msra.mxu0 %v2497
        %2513 = vmatpush.bf16.msra.mxu0 %v2496
        %2514 = vmatpush.bf16.msra.mxu0 %v2495
        %2515 = vmatpush.bf16.msra.mxu0 %v2494
        %2516 = vmatpush.bf16.msra.mxu0 %v2493
        %2517 = vmatmul.bf16.gmra.mxu0 %v1826
        %v2518 = vpop.f32.mrf.mxu0
        %v2519 = vadd.f32 0.0, %v2518
        %v2520 = vpop.f32.mrf.mxu0
        %v2521 = vadd.f32 0.0, %v2520
        %2522 = vmatmul.bf16.gmra.mxu0 %v1827
        %v2523 = vpop.f32.mrf.mxu0
        %v2524 = vadd.f32 0.0, %v2523
        %v2525 = vpop.f32.mrf.mxu0
        %v2526 = vadd.f32 0.0, %v2525
        %2527 = vmatmul.bf16.gmra.mxu0 %v1828
        %v2528 = vpop.f32.mrf.mxu0
        %v2529 = vadd.f32 0.0, %v2528
        %v2530 = vpop.f32.mrf.mxu0
        %v2531 = vadd.f32 0.0, %v2530
        %2532 = vmatmul.bf16.gmra.mxu0 %v1829
        %v2533 = vpop.f32.mrf.mxu0
        %v2534 = vadd.f32 0.0, %v2533
        %v2535 = vpop.f32.mrf.mxu0
        %v2536 = vadd.f32 0.0, %v2535
        %2537 = vmatmul.bf16.gmra.mxu0 %v1830
        %v2538 = vpop.f32.mrf.mxu0
        %v2539 = vadd.f32 0.0, %v2538
        %v2540 = vpop.f32.mrf.mxu0
        %v2541 = vadd.f32 0.0, %v2540
        %2542 = vmatmul.bf16.gmra.mxu0 %v1831
        %v2543 = vpop.f32.mrf.mxu0
        %v2544 = vadd.f32 0.0, %v2543
        %v2545 = vpop.f32.mrf.mxu0
        %v2546 = vadd.f32 0.0, %v2545
        %2547 = vmatmul.bf16.gmra.mxu0 %v1832
        %v2548 = vpop.f32.mrf.mxu0
        %v2549 = vadd.f32 0.0, %v2548
        %v2550 = vpop.f32.mrf.mxu0
        %v2551 = vadd.f32 0.0, %v2550
        %2552 = vmatmul.bf16.gmra.mxu0 %v1833
        %v2553 = vpop.f32.mrf.mxu0
        %v2554 = vadd.f32 0.0, %v2553
        %v2555 = vpop.f32.mrf.mxu0
        %v2556 = vadd.f32 0.0, %v2555
        %2557 = vmatmul.bf16.gmra.mxu0 %v1834
        %v2558 = vpop.f32.mrf.mxu0
        %v2559 = vadd.f32 0.0, %v2558
        %v2560 = vpop.f32.mrf.mxu0
        %v2561 = vadd.f32 0.0, %v2560
        %2562 = vmatmul.bf16.gmra.mxu0 %v1835
        %v2563 = vpop.f32.mrf.mxu0
        %v2564 = vadd.f32 0.0, %v2563
        %v2565 = vpop.f32.mrf.mxu0
        %v2566 = vadd.f32 0.0, %v2565
        %2567 = vmatmul.bf16.gmra.mxu0 %v1836
        %v2568 = vpop.f32.mrf.mxu0
        %v2569 = vadd.f32 0.0, %v2568
        %v2570 = vpop.f32.mrf.mxu0
        %v2571 = vadd.f32 0.0, %v2570
        %2572 = vmatmul.bf16.gmra.mxu0 %v1837
        %v2573 = vpop.f32.mrf.mxu0
        %v2574 = vadd.f32 0.0, %v2573
        %v2575 = vpop.f32.mrf.mxu0
        %v2576 = vadd.f32 0.0, %v2575
        %2577 = vmatmul.bf16.gmra.mxu0 %v1838
        %v2578 = vpop.f32.mrf.mxu0
        %v2579 = vadd.f32 0.0, %v2578
        %v2580 = vpop.f32.mrf.mxu0
        %v2581 = vadd.f32 0.0, %v2580
        %2582 = vmatmul.bf16.gmra.mxu0 %v1839
        %v2583 = vpop.f32.mrf.mxu0
        %v2584 = vadd.f32 0.0, %v2583
        %v2585 = vpop.f32.mrf.mxu0
        %v2586 = vadd.f32 0.0, %v2585
        %2587 = vmatmul.bf16.gmra.mxu0 %v1840
        %v2588 = vpop.f32.mrf.mxu0
        %v2589 = vadd.f32 0.0, %v2588
        %v2590 = vpop.f32.mrf.mxu0
        %v2591 = vadd.f32 0.0, %v2590
        %2592 = vmatmul.bf16.gmra.mxu0 %v2459
        %v2593 = vpop.f32.mrf.mxu0
        %v2594 = vadd.f32 0.0, %v2593
        %v2595 = vpop.f32.mrf.mxu0
        %v2596 = vadd.f32 0.0, %v2595
        %2597 = vdwg.mxu0
        %v2598 = vadd.f32 %v2400, %v2519
        %v2599 = vadd.f32 %v2401, %v2521
        %v2600 = vadd.f32 %v2402, %v2524
        %v2601 = vadd.f32 %v2403, %v2526
        %v2602 = vadd.f32 %v2404, %v2529
        %v2603 = vadd.f32 %v2405, %v2531
        %v2604 = vadd.f32 %v2406, %v2534
        %v2605 = vadd.f32 %v2407, %v2536
        %v2606 = vadd.f32 %v2408, %v2539
        %v2607 = vadd.f32 %v2409, %v2541
        %v2608 = vadd.f32 %v2410, %v2544
        %v2609 = vadd.f32 %v2411, %v2546
        %v2610 = vadd.f32 %v2412, %v2549
        %v2611 = vadd.f32 %v2413, %v2551
        %v2612 = vadd.f32 %v2414, %v2554
        %v2613 = vadd.f32 %v2415, %v2556
        %v2614 = vadd.f32 %v2416, %v2559
        %v2615 = vadd.f32 %v2417, %v2561
        %v2616 = vadd.f32 %v2418, %v2564
        %v2617 = vadd.f32 %v2419, %v2566
        %v2618 = vadd.f32 %v2420, %v2569
        %v2619 = vadd.f32 %v2421, %v2571
        %v2620 = vadd.f32 %v2422, %v2574
        %v2621 = vadd.f32 %v2423, %v2576
        %v2622 = vadd.f32 %v2424, %v2579
        %v2623 = vadd.f32 %v2425, %v2581
        %v2624 = vadd.f32 %v2426, %v2584
        %v2625 = vadd.f32 %v2427, %v2586
        %v2626 = vadd.f32 %v2428, %v2589
        %v2627 = vadd.f32 %v2429, %v2591
        %v2628 = vadd.f32 %v2430, %v2594
        %v2629 = vadd.f32 %v2431, %v2596
        %s2630 = scalar_lea.vmem [#allocation6], 384
        %v2631 = vld [vmem:[%s2630] sm:$0xf]
        %v2632 = vld [vmem:[%s2630 + $0x4] sm:$0xf]
        %v2633 = vld [vmem:[%s2630 + $0x8] sm:$0xf]
        %v2634 = vld [vmem:[%s2630 + $0xc] sm:$0xf]
        %v2635 = vld [vmem:[%s2630 + $0x10] sm:$0xf]
        %v2636 = vld [vmem:[%s2630 + $0x14] sm:$0xf]
        %v2637 = vld [vmem:[%s2630 + $0x18] sm:$0xf]
        %v2638 = vld [vmem:[%s2630 + $0x1c] sm:$0xf]
        %v2639 = vld [vmem:[%s2630 + $0x20] sm:$0xf]
        %v2640 = vld [vmem:[%s2630 + $0x24] sm:$0xf]
        %v2641 = vld [vmem:[%s2630 + $0x28] sm:$0xf]
        %v2642 = vld [vmem:[%s2630 + $0x2c] sm:$0xf]
        %v2643 = vld [vmem:[%s2630 + $0x30] sm:$0xf]
        %v2644 = vld [vmem:[%s2630 + $0x34] sm:$0xf]
        %v2645 = vld [vmem:[%s2630 + $0x38] sm:$0xf]
        %v2646 = vld [vmem:[%s2630 + $0x3c] sm:$0xf]
        %v2649 = vunpack.c.l.b16 %v788
        %v2650 = vunpack.c.l.b16 %v789
        %v2651 = vpack.c.b16 %v2650, %v2649
        %v2669 = vunpack.c.l.b16 %v2631
        %v2670 = vunpack.c.l.b16 %v2632
        %v2671 = vunpack.c.l.b16 %v2633
        %v2672 = vunpack.c.l.b16 %v2634
        %v2673 = vunpack.c.l.b16 %v2635
        %v2674 = vunpack.c.l.b16 %v2636
        %v2675 = vunpack.c.l.b16 %v2637
        %v2676 = vunpack.c.l.b16 %v2638
        %v2677 = vunpack.c.l.b16 %v2639
        %v2678 = vunpack.c.l.b16 %v2640
        %v2679 = vunpack.c.l.b16 %v2641
        %v2680 = vunpack.c.l.b16 %v2642
        %v2681 = vunpack.c.l.b16 %v2643
        %v2682 = vunpack.c.l.b16 %v2644
        %v2683 = vunpack.c.l.b16 %v2645
        %v2684 = vunpack.c.l.b16 %v2646
        %v2685 = vpack.c.b16 %v2670, %v2669
        %v2686 = vpack.c.b16 %v2672, %v2671
        %v2687 = vpack.c.b16 %v2674, %v2673
        %v2688 = vpack.c.b16 %v2676, %v2675
        %v2689 = vpack.c.b16 %v2678, %v2677
        %v2690 = vpack.c.b16 %v2680, %v2679
        %v2691 = vpack.c.b16 %v2682, %v2681
        %v2692 = vpack.c.b16 %v2684, %v2683
        %2701 = vmatpush.bf16.msra.mxu0 %v2692
        %2702 = vmatpush.bf16.msra.mxu0 %v2691
        %2703 = vmatpush.bf16.msra.mxu0 %v2690
        %2704 = vmatpush.bf16.msra.mxu0 %v2689
        %2705 = vmatpush.bf16.msra.mxu0 %v2688
        %2706 = vmatpush.bf16.msra.mxu0 %v2687
        %2707 = vmatpush.bf16.msra.mxu0 %v2686
        %2708 = vmatpush.bf16.msra.mxu0 %v2685
        %2709 = vmatmul.bf16.gmra.mxu0 %v1478
        %v2710 = vpop.f32.mrf.mxu0
        %v2711 = vadd.f32 0.0, %v2710
        %v2712 = vpop.f32.mrf.mxu0
        %v2713 = vadd.f32 0.0, %v2712
        %2714 = vmatmul.bf16.gmra.mxu0 %v1479
        %v2715 = vpop.f32.mrf.mxu0
        %v2716 = vadd.f32 0.0, %v2715
        %v2717 = vpop.f32.mrf.mxu0
        %v2718 = vadd.f32 0.0, %v2717
        %2719 = vmatmul.bf16.gmra.mxu0 %v1480
        %v2720 = vpop.f32.mrf.mxu0
        %v2721 = vadd.f32 0.0, %v2720
        %v2722 = vpop.f32.mrf.mxu0
        %v2723 = vadd.f32 0.0, %v2722
        %2724 = vmatmul.bf16.gmra.mxu0 %v1481
        %v2725 = vpop.f32.mrf.mxu0
        %v2726 = vadd.f32 0.0, %v2725
        %v2727 = vpop.f32.mrf.mxu0
        %v2728 = vadd.f32 0.0, %v2727
        %2729 = vmatmul.bf16.gmra.mxu0 %v1482
        %v2730 = vpop.f32.mrf.mxu0
        %v2731 = vadd.f32 0.0, %v2730
        %v2732 = vpop.f32.mrf.mxu0
        %v2733 = vadd.f32 0.0, %v2732
        %2734 = vmatmul.bf16.gmra.mxu0 %v1483
        %v2735 = vpop.f32.mrf.mxu0
        %v2736 = vadd.f32 0.0, %v2735
        %v2737 = vpop.f32.mrf.mxu0
        %v2738 = vadd.f32 0.0, %v2737
        %2739 = vmatmul.bf16.gmra.mxu0 %v1484
        %v2740 = vpop.f32.mrf.mxu0
        %v2741 = vadd.f32 0.0, %v2740
        %v2742 = vpop.f32.mrf.mxu0
        %v2743 = vadd.f32 0.0, %v2742
        %2744 = vmatmul.bf16.gmra.mxu0 %v1485
        %v2745 = vpop.f32.mrf.mxu0
        %v2746 = vadd.f32 0.0, %v2745
        %v2747 = vpop.f32.mrf.mxu0
        %v2748 = vadd.f32 0.0, %v2747
        %2749 = vmatmul.bf16.gmra.mxu0 %v1486
        %v2750 = vpop.f32.mrf.mxu0
        %v2751 = vadd.f32 0.0, %v2750
        %v2752 = vpop.f32.mrf.mxu0
        %v2753 = vadd.f32 0.0, %v2752
        %2754 = vmatmul.bf16.gmra.mxu0 %v1487
        %v2755 = vpop.f32.mrf.mxu0
        %v2756 = vadd.f32 0.0, %v2755
        %v2757 = vpop.f32.mrf.mxu0
        %v2758 = vadd.f32 0.0, %v2757
        %2759 = vmatmul.bf16.gmra.mxu0 %v1488
        %v2760 = vpop.f32.mrf.mxu0
        %v2761 = vadd.f32 0.0, %v2760
        %v2762 = vpop.f32.mrf.mxu0
        %v2763 = vadd.f32 0.0, %v2762
        %2764 = vmatmul.bf16.gmra.mxu0 %v1489
        %v2765 = vpop.f32.mrf.mxu0
        %v2766 = vadd.f32 0.0, %v2765
        %v2767 = vpop.f32.mrf.mxu0
        %v2768 = vadd.f32 0.0, %v2767
        %2769 = vmatmul.bf16.gmra.mxu0 %v1490
        %v2770 = vpop.f32.mrf.mxu0
        %v2771 = vadd.f32 0.0, %v2770
        %v2772 = vpop.f32.mrf.mxu0
        %v2773 = vadd.f32 0.0, %v2772
        %2774 = vmatmul.bf16.gmra.mxu0 %v1491
        %v2775 = vpop.f32.mrf.mxu0
        %v2776 = vadd.f32 0.0, %v2775
        %v2777 = vpop.f32.mrf.mxu0
        %v2778 = vadd.f32 0.0, %v2777
        %2779 = vmatmul.bf16.gmra.mxu0 %v2047
        %v2780 = vpop.f32.mrf.mxu0
        %v2781 = vadd.f32 0.0, %v2780
        %v2782 = vpop.f32.mrf.mxu0
        %v2783 = vadd.f32 0.0, %v2782
        %2784 = vmatmul.bf16.gmra.mxu0 %v2651
        %v2785 = vpop.f32.mrf.mxu0
        %v2786 = vadd.f32 0.0, %v2785
        %v2787 = vpop.f32.mrf.mxu0
        %v2788 = vadd.f32 0.0, %v2787
        %2789 = vdwg.mxu0
        %v2790 = vadd.f32 %v2598, %v2711
        %v2791 = vadd.f32 %v2599, %v2713
        %v2792 = vadd.f32 %v2600, %v2716
        %v2793 = vadd.f32 %v2601, %v2718
        %v2794 = vadd.f32 %v2602, %v2721
        %v2795 = vadd.f32 %v2603, %v2723
        %v2796 = vadd.f32 %v2604, %v2726
        %v2797 = vadd.f32 %v2605, %v2728
        %v2798 = vadd.f32 %v2606, %v2731
        %v2799 = vadd.f32 %v2607, %v2733
        %v2800 = vadd.f32 %v2608, %v2736
        %v2801 = vadd.f32 %v2609, %v2738
        %v2802 = vadd.f32 %v2610, %v2741
        %v2803 = vadd.f32 %v2611, %v2743
        %v2804 = vadd.f32 %v2612, %v2746
        %v2805 = vadd.f32 %v2613, %v2748
        %v2806 = vadd.f32 %v2614, %v2751
        %v2807 = vadd.f32 %v2615, %v2753
        %v2808 = vadd.f32 %v2616, %v2756
        %v2809 = vadd.f32 %v2617, %v2758
        %v2810 = vadd.f32 %v2618, %v2761
        %v2811 = vadd.f32 %v2619, %v2763
        %v2812 = vadd.f32 %v2620, %v2766
        %v2813 = vadd.f32 %v2621, %v2768
        %v2814 = vadd.f32 %v2622, %v2771
        %v2815 = vadd.f32 %v2623, %v2773
        %v2816 = vadd.f32 %v2624, %v2776
        %v2817 = vadd.f32 %v2625, %v2778
        %v2818 = vadd.f32 %v2626, %v2781
        %v2819 = vadd.f32 %v2627, %v2783
        %v2820 = vadd.f32 %v2628, %v2786
        %v2821 = vadd.f32 %v2629, %v2788
        %v2823 = vshrl.u32 %v788, 16
        %v2825 = vrot.slane %v2823, 4
        %v2826 = vshll.u32 %v788, 16
        %v2828 = vrot.slane %v2826, 5
        %v2829 = vor.u32 %v2825, %v2828
        %v2830 = vrot.slane %v2829, 4
        %v2832 = vshll.u32 %v789, 16
        %v2834 = vrot.slane %v2832, 5
        %v2835 = vsel %vm809, %v2830, %v2834
        %v2836 = vshrl.u32 %v789, 16
        %v2838 = vrot.slane %v2836, 4
        %v2839 = vor.u32 %v2838, %v2834
        %v2840 = vrot.slane %v2839, 4
        %v2842 = vshll.u32 %v790, 16
        %v2844 = vrot.slane %v2842, 5
        %v2845 = vsel %vm809, %v2840, %v2844
        %s2846 = scalar_lea.vmem [#allocation6], 448
        %v2847 = vld [vmem:[%s2846] sm:$0xf]
        %v2848 = vld [vmem:[%s2846 + $0x4] sm:$0xf]
        %v2849 = vld [vmem:[%s2846 + $0x8] sm:$0xf]
        %v2850 = vld [vmem:[%s2846 + $0xc] sm:$0xf]
        %v2851 = vld [vmem:[%s2846 + $0x10] sm:$0xf]
        %v2852 = vld [vmem:[%s2846 + $0x14] sm:$0xf]
        %v2853 = vld [vmem:[%s2846 + $0x18] sm:$0xf]
        %v2854 = vld [vmem:[%s2846 + $0x1c] sm:$0xf]
        %v2855 = vld [vmem:[%s2846 + $0x20] sm:$0xf]
        %v2856 = vld [vmem:[%s2846 + $0x24] sm:$0xf]
        %v2857 = vld [vmem:[%s2846 + $0x28] sm:$0xf]
        %v2858 = vld [vmem:[%s2846 + $0x2c] sm:$0xf]
        %v2859 = vld [vmem:[%s2846 + $0x30] sm:$0xf]
        %v2860 = vld [vmem:[%s2846 + $0x34] sm:$0xf]
        %v2861 = vld [vmem:[%s2846 + $0x38] sm:$0xf]
        %v2862 = vld [vmem:[%s2846 + $0x3c] sm:$0xf]
        %v2863 = vunpack.c.l.b16 %v2835
        %v2864 = vunpack.c.l.b16 %v2845
        %v2865 = vpack.c.b16 %v2864, %v2863
        %v2883 = vunpack.c.l.b16 %v2847
        %v2884 = vunpack.c.l.b16 %v2848
        %v2885 = vunpack.c.l.b16 %v2849
        %v2886 = vunpack.c.l.b16 %v2850
        %v2887 = vunpack.c.l.b16 %v2851
        %v2888 = vunpack.c.l.b16 %v2852
        %v2889 = vunpack.c.l.b16 %v2853
        %v2890 = vunpack.c.l.b16 %v2854
        %v2891 = vunpack.c.l.b16 %v2855
        %v2892 = vunpack.c.l.b16 %v2856
        %v2893 = vunpack.c.l.b16 %v2857
        %v2894 = vunpack.c.l.b16 %v2858
        %v2895 = vunpack.c.l.b16 %v2859
        %v2896 = vunpack.c.l.b16 %v2860
        %v2897 = vunpack.c.l.b16 %v2861
        %v2898 = vunpack.c.l.b16 %v2862
        %v2899 = vpack.c.b16 %v2884, %v2883
        %v2900 = vpack.c.b16 %v2886, %v2885
        %v2901 = vpack.c.b16 %v2888, %v2887
        %v2902 = vpack.c.b16 %v2890, %v2889
        %v2903 = vpack.c.b16 %v2892, %v2891
        %v2904 = vpack.c.b16 %v2894, %v2893
        %v2905 = vpack.c.b16 %v2896, %v2895
        %v2906 = vpack.c.b16 %v2898, %v2897
        %2915 = vmatpush.bf16.msra.mxu0 %v2906
        %2916 = vmatpush.bf16.msra.mxu0 %v2905
        %2917 = vmatpush.bf16.msra.mxu0 %v2904
        %2918 = vmatpush.bf16.msra.mxu0 %v2903
        %2919 = vmatpush.bf16.msra.mxu0 %v2902
        %2920 = vmatpush.bf16.msra.mxu0 %v2901
        %2921 = vmatpush.bf16.msra.mxu0 %v2900
        %2922 = vmatpush.bf16.msra.mxu0 %v2899
        %2923 = vmatmul.bf16.gmra.mxu0 %v1245
        %v2924 = vpop.f32.mrf.mxu0
        %v2925 = vadd.f32 0.0, %v2924
        %v2926 = vpop.f32.mrf.mxu0
        %v2927 = vadd.f32 0.0, %v2926
        %2928 = vmatmul.bf16.gmra.mxu0 %v1246
        %v2929 = vpop.f32.mrf.mxu0
        %v2930 = vadd.f32 0.0, %v2929
        %v2931 = vpop.f32.mrf.mxu0
        %v2932 = vadd.f32 0.0, %v2931
        %2933 = vmatmul.bf16.gmra.mxu0 %v1247
        %v2934 = vpop.f32.mrf.mxu0
        %v2935 = vadd.f32 0.0, %v2934
        %v2936 = vpop.f32.mrf.mxu0
        %v2937 = vadd.f32 0.0, %v2936
        %2938 = vmatmul.bf16.gmra.mxu0 %v1248
        %v2939 = vpop.f32.mrf.mxu0
        %v2940 = vadd.f32 0.0, %v2939
        %v2941 = vpop.f32.mrf.mxu0
        %v2942 = vadd.f32 0.0, %v2941
        %2943 = vmatmul.bf16.gmra.mxu0 %v1249
        %v2944 = vpop.f32.mrf.mxu0
        %v2945 = vadd.f32 0.0, %v2944
        %v2946 = vpop.f32.mrf.mxu0
        %v2947 = vadd.f32 0.0, %v2946
        %2948 = vmatmul.bf16.gmra.mxu0 %v1250
        %v2949 = vpop.f32.mrf.mxu0
        %v2950 = vadd.f32 0.0, %v2949
        %v2951 = vpop.f32.mrf.mxu0
        %v2952 = vadd.f32 0.0, %v2951
        %2953 = vmatmul.bf16.gmra.mxu0 %v1251
        %v2954 = vpop.f32.mrf.mxu0
        %v2955 = vadd.f32 0.0, %v2954
        %v2956 = vpop.f32.mrf.mxu0
        %v2957 = vadd.f32 0.0, %v2956
        %2958 = vmatmul.bf16.gmra.mxu0 %v1252
        %v2959 = vpop.f32.mrf.mxu0
        %v2960 = vadd.f32 0.0, %v2959
        %v2961 = vpop.f32.mrf.mxu0
        %v2962 = vadd.f32 0.0, %v2961
        %2963 = vmatmul.bf16.gmra.mxu0 %v1253
        %v2964 = vpop.f32.mrf.mxu0
        %v2965 = vadd.f32 0.0, %v2964
        %v2966 = vpop.f32.mrf.mxu0
        %v2967 = vadd.f32 0.0, %v2966
        %2968 = vmatmul.bf16.gmra.mxu0 %v1254
        %v2969 = vpop.f32.mrf.mxu0
        %v2970 = vadd.f32 0.0, %v2969
        %v2971 = vpop.f32.mrf.mxu0
        %v2972 = vadd.f32 0.0, %v2971
        %2973 = vmatmul.bf16.gmra.mxu0 %v1255
        %v2974 = vpop.f32.mrf.mxu0
        %v2975 = vadd.f32 0.0, %v2974
        %v2976 = vpop.f32.mrf.mxu0
        %v2977 = vadd.f32 0.0, %v2976
        %2978 = vmatmul.bf16.gmra.mxu0 %v1256
        %v2979 = vpop.f32.mrf.mxu0
        %v2980 = vadd.f32 0.0, %v2979
        %v2981 = vpop.f32.mrf.mxu0
        %v2982 = vadd.f32 0.0, %v2981
        %2983 = vmatmul.bf16.gmra.mxu0 %v1257
        %v2984 = vpop.f32.mrf.mxu0
        %v2985 = vadd.f32 0.0, %v2984
        %v2986 = vpop.f32.mrf.mxu0
        %v2987 = vadd.f32 0.0, %v2986
        %2988 = vmatmul.bf16.gmra.mxu0 %v1258
        %v2989 = vpop.f32.mrf.mxu0
        %v2990 = vadd.f32 0.0, %v2989
        %v2991 = vpop.f32.mrf.mxu0
        %v2992 = vadd.f32 0.0, %v2991
        %2993 = vmatmul.bf16.gmra.mxu0 %v2261
        %v2994 = vpop.f32.mrf.mxu0
        %v2995 = vadd.f32 0.0, %v2994
        %v2996 = vpop.f32.mrf.mxu0
        %v2997 = vadd.f32 0.0, %v2996
        %2998 = vmatmul.bf16.gmra.mxu0 %v2865
        %v2999 = vpop.f32.mrf.mxu0
        %v3000 = vadd.f32 0.0, %v2999
        %v3001 = vpop.f32.mrf.mxu0
        %v3002 = vadd.f32 0.0, %v3001
        %3003 = vdwg.mxu0
        %v3004 = vadd.f32 %v2790, %v2925
        %v3005 = vadd.f32 %v2791, %v2927
        %v3006 = vadd.f32 %v2792, %v2930
        %v3007 = vadd.f32 %v2793, %v2932
        %v3008 = vadd.f32 %v2794, %v2935
        %v3009 = vadd.f32 %v2795, %v2937
        %v3010 = vadd.f32 %v2796, %v2940
        %v3011 = vadd.f32 %v2797, %v2942
        %v3012 = vadd.f32 %v2798, %v2945
        %v3013 = vadd.f32 %v2799, %v2947
        %v3014 = vadd.f32 %v2800, %v2950
        %v3015 = vadd.f32 %v2801, %v2952
        %v3016 = vadd.f32 %v2802, %v2955
        %v3017 = vadd.f32 %v2803, %v2957
        %v3018 = vadd.f32 %v2804, %v2960
        %v3019 = vadd.f32 %v2805, %v2962
        %v3020 = vadd.f32 %v2806, %v2965
        %v3021 = vadd.f32 %v2807, %v2967
        %v3022 = vadd.f32 %v2808, %v2970
        %v3023 = vadd.f32 %v2809, %v2972
        %v3024 = vadd.f32 %v2810, %v2975
        %v3025 = vadd.f32 %v2811, %v2977
        %v3026 = vadd.f32 %v2812, %v2980
        %v3027 = vadd.f32 %v2813, %v2982
        %v3028 = vadd.f32 %v2814, %v2985
        %v3029 = vadd.f32 %v2815, %v2987
        %v3030 = vadd.f32 %v2816, %v2990
        %v3031 = vadd.f32 %v2817, %v2992
        %v3032 = vadd.f32 %v2818, %v2995
        %v3033 = vadd.f32 %v2819, %v2997
        %v3034 = vadd.f32 %v2820, %v3000
        %v3035 = vadd.f32 %v2821, %v3002
        %v3037 = vrot.slane %v788, 5
        %v3038 = vrot.slane %v3037, 4
        %v3039 = vrot.slane %v789, 5
        %v3040 = vsel %vm1663, %v3038, %v3039
        %v3041 = vrot.slane %v3039, 4
        %v3042 = vrot.slane %v790, 5
        %v3043 = vsel %vm1663, %v3041, %v3042
        %s3044 = scalar_lea.vmem [#allocation6], 512
        %v3045 = vld [vmem:[%s3044] sm:$0xf]
        %v3046 = vld [vmem:[%s3044 + $0x4] sm:$0xf]
        %v3047 = vld [vmem:[%s3044 + $0x8] sm:$0xf]
        %v3048 = vld [vmem:[%s3044 + $0xc] sm:$0xf]
        %v3049 = vld [vmem:[%s3044 + $0x10] sm:$0xf]
        %v3050 = vld [vmem:[%s3044 + $0x14] sm:$0xf]
        %v3051 = vld [vmem:[%s3044 + $0x18] sm:$0xf]
        %v3052 = vld [vmem:[%s3044 + $0x1c] sm:$0xf]
        %v3053 = vld [vmem:[%s3044 + $0x20] sm:$0xf]
        %v3054 = vld [vmem:[%s3044 + $0x24] sm:$0xf]
        %v3055 = vld [vmem:[%s3044 + $0x28] sm:$0xf]
        %v3056 = vld [vmem:[%s3044 + $0x2c] sm:$0xf]
        %v3057 = vld [vmem:[%s3044 + $0x30] sm:$0xf]
        %v3058 = vld [vmem:[%s3044 + $0x34] sm:$0xf]
        %v3059 = vld [vmem:[%s3044 + $0x38] sm:$0xf]
        %v3060 = vld [vmem:[%s3044 + $0x3c] sm:$0xf]
        %v3061 = vunpack.c.l.b16 %v3040
        %v3062 = vunpack.c.l.b16 %v3043
        %v3063 = vpack.c.b16 %v3062, %v3061
        %v3081 = vunpack.c.l.b16 %v3045
        %v3082 = vunpack.c.l.b16 %v3046
        %v3083 = vunpack.c.l.b16 %v3047
        %v3084 = vunpack.c.l.b16 %v3048
        %v3085 = vunpack.c.l.b16 %v3049
        %v3086 = vunpack.c.l.b16 %v3050
        %v3087 = vunpack.c.l.b16 %v3051
        %v3088 = vunpack.c.l.b16 %v3052
        %v3089 = vunpack.c.l.b16 %v3053
        %v3090 = vunpack.c.l.b16 %v3054
        %v3091 = vunpack.c.l.b16 %v3055
        %v3092 = vunpack.c.l.b16 %v3056
        %v3093 = vunpack.c.l.b16 %v3057
        %v3094 = vunpack.c.l.b16 %v3058
        %v3095 = vunpack.c.l.b16 %v3059
        %v3096 = vunpack.c.l.b16 %v3060
        %v3097 = vpack.c.b16 %v3082, %v3081
        %v3098 = vpack.c.b16 %v3084, %v3083
        %v3099 = vpack.c.b16 %v3086, %v3085
        %v3100 = vpack.c.b16 %v3088, %v3087
        %v3101 = vpack.c.b16 %v3090, %v3089
        %v3102 = vpack.c.b16 %v3092, %v3091
        %v3103 = vpack.c.b16 %v3094, %v3093
        %v3104 = vpack.c.b16 %v3096, %v3095
        %3113 = vmatpush.bf16.msra.mxu0 %v3104
        %3114 = vmatpush.bf16.msra.mxu0 %v3103
        %3115 = vmatpush.bf16.msra.mxu0 %v3102
        %3116 = vmatpush.bf16.msra.mxu0 %v3101
        %3117 = vmatpush.bf16.msra.mxu0 %v3100
        %3118 = vmatpush.bf16.msra.mxu0 %v3099
        %3119 = vmatpush.bf16.msra.mxu0 %v3098
        %3120 = vmatpush.bf16.msra.mxu0 %v3097
        %3121 = vmatmul.bf16.gmra.mxu0 %v1827
        %v3122 = vpop.f32.mrf.mxu0
        %v3123 = vadd.f32 0.0, %v3122
        %v3124 = vpop.f32.mrf.mxu0
        %v3125 = vadd.f32 0.0, %v3124
        %3126 = vmatmul.bf16.gmra.mxu0 %v1828
        %v3127 = vpop.f32.mrf.mxu0
        %v3128 = vadd.f32 0.0, %v3127
        %v3129 = vpop.f32.mrf.mxu0
        %v3130 = vadd.f32 0.0, %v3129
        %3131 = vmatmul.bf16.gmra.mxu0 %v1829
        %v3132 = vpop.f32.mrf.mxu0
        %v3133 = vadd.f32 0.0, %v3132
        %v3134 = vpop.f32.mrf.mxu0
        %v3135 = vadd.f32 0.0, %v3134
        %3136 = vmatmul.bf16.gmra.mxu0 %v1830
        %v3137 = vpop.f32.mrf.mxu0
        %v3138 = vadd.f32 0.0, %v3137
        %v3139 = vpop.f32.mrf.mxu0
        %v3140 = vadd.f32 0.0, %v3139
        %3141 = vmatmul.bf16.gmra.mxu0 %v1831
        %v3142 = vpop.f32.mrf.mxu0
        %v3143 = vadd.f32 0.0, %v3142
        %v3144 = vpop.f32.mrf.mxu0
        %v3145 = vadd.f32 0.0, %v3144
        %3146 = vmatmul.bf16.gmra.mxu0 %v1832
        %v3147 = vpop.f32.mrf.mxu0
        %v3148 = vadd.f32 0.0, %v3147
        %v3149 = vpop.f32.mrf.mxu0
        %v3150 = vadd.f32 0.0, %v3149
        %3151 = vmatmul.bf16.gmra.mxu0 %v1833
        %v3152 = vpop.f32.mrf.mxu0
        %v3153 = vadd.f32 0.0, %v3152
        %v3154 = vpop.f32.mrf.mxu0
        %v3155 = vadd.f32 0.0, %v3154
        %3156 = vmatmul.bf16.gmra.mxu0 %v1834
        %v3157 = vpop.f32.mrf.mxu0
        %v3158 = vadd.f32 0.0, %v3157
        %v3159 = vpop.f32.mrf.mxu0
        %v3160 = vadd.f32 0.0, %v3159
        %3161 = vmatmul.bf16.gmra.mxu0 %v1835
        %v3162 = vpop.f32.mrf.mxu0
        %v3163 = vadd.f32 0.0, %v3162
        %v3164 = vpop.f32.mrf.mxu0
        %v3165 = vadd.f32 0.0, %v3164
        %3166 = vmatmul.bf16.gmra.mxu0 %v1836
        %v3167 = vpop.f32.mrf.mxu0
        %v3168 = vadd.f32 0.0, %v3167
        %v3169 = vpop.f32.mrf.mxu0
        %v3170 = vadd.f32 0.0, %v3169
        %3171 = vmatmul.bf16.gmra.mxu0 %v1837
        %v3172 = vpop.f32.mrf.mxu0
        %v3173 = vadd.f32 0.0, %v3172
        %v3174 = vpop.f32.mrf.mxu0
        %v3175 = vadd.f32 0.0, %v3174
        %3176 = vmatmul.bf16.gmra.mxu0 %v1838
        %v3177 = vpop.f32.mrf.mxu0
        %v3178 = vadd.f32 0.0, %v3177
        %v3179 = vpop.f32.mrf.mxu0
        %v3180 = vadd.f32 0.0, %v3179
        %3181 = vmatmul.bf16.gmra.mxu0 %v1839
        %v3182 = vpop.f32.mrf.mxu0
        %v3183 = vadd.f32 0.0, %v3182
        %v3184 = vpop.f32.mrf.mxu0
        %v3185 = vadd.f32 0.0, %v3184
        %3186 = vmatmul.bf16.gmra.mxu0 %v1840
        %v3187 = vpop.f32.mrf.mxu0
        %v3188 = vadd.f32 0.0, %v3187
        %v3189 = vpop.f32.mrf.mxu0
        %v3190 = vadd.f32 0.0, %v3189
        %3191 = vmatmul.bf16.gmra.mxu0 %v2459
        %v3192 = vpop.f32.mrf.mxu0
        %v3193 = vadd.f32 0.0, %v3192
        %v3194 = vpop.f32.mrf.mxu0
        %v3195 = vadd.f32 0.0, %v3194
        %3196 = vmatmul.bf16.gmra.mxu0 %v3063
        %v3197 = vpop.f32.mrf.mxu0
        %v3198 = vadd.f32 0.0, %v3197
        %v3199 = vpop.f32.mrf.mxu0
        %v3200 = vadd.f32 0.0, %v3199
        %3201 = vdwg.mxu0
        %v3202 = vadd.f32 %v3004, %v3123
        %v3203 = vadd.f32 %v3005, %v3125
        %v3204 = vadd.f32 %v3006, %v3128
        %v3205 = vadd.f32 %v3007, %v3130
        %v3206 = vadd.f32 %v3008, %v3133
        %v3207 = vadd.f32 %v3009, %v3135
        %v3208 = vadd.f32 %v3010, %v3138
        %v3209 = vadd.f32 %v3011, %v3140
        %v3210 = vadd.f32 %v3012, %v3143
        %v3211 = vadd.f32 %v3013, %v3145
        %v3212 = vadd.f32 %v3014, %v3148
        %v3213 = vadd.f32 %v3015, %v3150
        %v3214 = vadd.f32 %v3016, %v3153
        %v3215 = vadd.f32 %v3017, %v3155
        %v3216 = vadd.f32 %v3018, %v3158
        %v3217 = vadd.f32 %v3019, %v3160
        %v3218 = vadd.f32 %v3020, %v3163
        %v3219 = vadd.f32 %v3021, %v3165
        %v3220 = vadd.f32 %v3022, %v3168
        %v3221 = vadd.f32 %v3023, %v3170
        %v3222 = vadd.f32 %v3024, %v3173
        %v3223 = vadd.f32 %v3025, %v3175
        %v3224 = vadd.f32 %v3026, %v3178
        %v3225 = vadd.f32 %v3027, %v3180
        %v3226 = vadd.f32 %v3028, %v3183
        %v3227 = vadd.f32 %v3029, %v3185
        %v3228 = vadd.f32 %v3030, %v3188
        %v3229 = vadd.f32 %v3031, %v3190
        %v3230 = vadd.f32 %v3032, %v3193
        %v3231 = vadd.f32 %v3033, %v3195
        %v3232 = vadd.f32 %v3034, %v3198
        %v3233 = vadd.f32 %v3035, %v3200
        %v3235 = vperm.slane %v736, 0
        %v3237 = vadd.f32 %v3202, %v3235
        %v3238 = vadd.f32 %v3203, %v3235
        %v3239 = vadd.f32 %v3204, %v3235
        %v3240 = vadd.f32 %v3205, %v3235
        %v3241 = vadd.f32 %v3206, %v3235
        %v3242 = vadd.f32 %v3207, %v3235
        %v3243 = vadd.f32 %v3208, %v3235
        %v3244 = vadd.f32 %v3209, %v3235
        %v3245 = vadd.f32 %v3210, %v3235
        %v3246 = vadd.f32 %v3211, %v3235
        %v3247 = vadd.f32 %v3212, %v3235
        %v3248 = vadd.f32 %v3213, %v3235
        %v3249 = vadd.f32 %v3214, %v3235
        %v3250 = vadd.f32 %v3215, %v3235
        %v3251 = vadd.f32 %v3216, %v3235
        %v3252 = vadd.f32 %v3217, %v3235
        %v3253 = vadd.f32 %v3218, %v3235
        %v3254 = vadd.f32 %v3219, %v3235
        %v3255 = vadd.f32 %v3220, %v3235
        %v3256 = vadd.f32 %v3221, %v3235
        %v3257 = vadd.f32 %v3222, %v3235
        %v3258 = vadd.f32 %v3223, %v3235
        %v3259 = vadd.f32 %v3224, %v3235
        %v3260 = vadd.f32 %v3225, %v3235
        %v3261 = vadd.f32 %v3226, %v3235
        %v3262 = vadd.f32 %v3227, %v3235
        %v3263 = vadd.f32 %v3228, %v3235
        %v3264 = vadd.f32 %v3229, %v3235
        %v3265 = vadd.f32 %v3230, %v3235
        %v3266 = vadd.f32 %v3231, %v3235
        %v3267 = vadd.f32 %v3232, %v3235
        %v3268 = vadd.f32 %v3233, %v3235
        %v3269 = vmax.f32 %v3237, 0.0
        %v3270 = vmax.f32 %v3238, 0.0
        %v3271 = vmax.f32 %v3239, 0.0
        %v3272 = vmax.f32 %v3240, 0.0
        %v3273 = vmax.f32 %v3241, 0.0
        %v3274 = vmax.f32 %v3242, 0.0
        %v3275 = vmax.f32 %v3243, 0.0
        %v3276 = vmax.f32 %v3244, 0.0
        %v3277 = vmax.f32 %v3245, 0.0
        %v3278 = vmax.f32 %v3246, 0.0
        %v3279 = vmax.f32 %v3247, 0.0
        %v3280 = vmax.f32 %v3248, 0.0
        %v3281 = vmax.f32 %v3249, 0.0
        %v3282 = vmax.f32 %v3250, 0.0
        %v3283 = vmax.f32 %v3251, 0.0
        %v3284 = vmax.f32 %v3252, 0.0
        %v3285 = vmax.f32 %v3253, 0.0
        %v3286 = vmax.f32 %v3254, 0.0
        %v3287 = vmax.f32 %v3255, 0.0
        %v3288 = vmax.f32 %v3256, 0.0
        %v3289 = vmax.f32 %v3257, 0.0
        %v3290 = vmax.f32 %v3258, 0.0
        %v3291 = vmax.f32 %v3259, 0.0
        %v3292 = vmax.f32 %v3260, 0.0
        %v3293 = vmax.f32 %v3261, 0.0
        %v3294 = vmax.f32 %v3262, 0.0
        %v3295 = vmax.f32 %v3263, 0.0
        %v3296 = vmax.f32 %v3264, 0.0
        %v3297 = vmax.f32 %v3265, 0.0
        %v3298 = vmax.f32 %v3266, 0.0
        %v3299 = vmax.f32 %v3267, 0.0
        %v3300 = vmax.f32 %v3268, 0.0
        %v3301 = vpack.c.bf16 %v3269, %v3269
        %v3302 = vpack.c.bf16 %v3270, %v3270
        %v3303 = vpack.c.bf16 %v3271, %v3271
        %v3304 = vpack.c.bf16 %v3272, %v3272
        %v3305 = vpack.c.bf16 %v3273, %v3273
        %v3306 = vpack.c.bf16 %v3274, %v3274
        %v3307 = vpack.c.bf16 %v3275, %v3275
        %v3308 = vpack.c.bf16 %v3276, %v3276
        %v3309 = vpack.c.bf16 %v3277, %v3277
        %v3310 = vpack.c.bf16 %v3278, %v3278
        %v3311 = vpack.c.bf16 %v3279, %v3279
        %v3312 = vpack.c.bf16 %v3280, %v3280
        %v3313 = vpack.c.bf16 %v3281, %v3281
        %v3314 = vpack.c.bf16 %v3282, %v3282
        %v3315 = vpack.c.bf16 %v3283, %v3283
        %v3316 = vpack.c.bf16 %v3284, %v3284
        %v3317 = vpack.c.bf16 %v3285, %v3285
        %v3318 = vpack.c.bf16 %v3286, %v3286
        %v3319 = vpack.c.bf16 %v3287, %v3287
        %v3320 = vpack.c.bf16 %v3288, %v3288
        %v3321 = vpack.c.bf16 %v3289, %v3289
        %v3322 = vpack.c.bf16 %v3290, %v3290
        %v3323 = vpack.c.bf16 %v3291, %v3291
        %v3324 = vpack.c.bf16 %v3292, %v3292
        %v3325 = vpack.c.bf16 %v3293, %v3293
        %v3326 = vpack.c.bf16 %v3294, %v3294
        %v3327 = vpack.c.bf16 %v3295, %v3295
        %v3328 = vpack.c.bf16 %v3296, %v3296
        %v3329 = vpack.c.bf16 %v3297, %v3297
        %v3330 = vpack.c.bf16 %v3298, %v3298
        %v3331 = vpack.c.bf16 %v3299, %v3299
        %v3332 = vpack.c.bf16 %v3300, %v3300
        %3333 = vst [vmem:[%s207] sm:$0xf] %v3301
        %3334 = vst [vmem:[%s207 + $0x4] sm:$0xf] %v3302
        %3335 = vst [vmem:[%s207 + $0x8] sm:$0xf] %v3303
        %3336 = vst [vmem:[%s207 + $0xc] sm:$0xf] %v3304
        %3337 = vst [vmem:[%s207 + $0x10] sm:$0xf] %v3305
        %3338 = vst [vmem:[%s207 + $0x14] sm:$0xf] %v3306
        %3339 = vst [vmem:[%s207 + $0x18] sm:$0xf] %v3307
        %3340 = vst [vmem:[%s207 + $0x1c] sm:$0xf] %v3308
        %3341 = vst [vmem:[%s207 + $0x20] sm:$0xf] %v3309
        %3342 = vst [vmem:[%s207 + $0x24] sm:$0xf] %v3310
        %3343 = vst [vmem:[%s207 + $0x28] sm:$0xf] %v3311
        %3344 = vst [vmem:[%s207 + $0x2c] sm:$0xf] %v3312
        %3345 = vst [vmem:[%s207 + $0x30] sm:$0xf] %v3313
        %3346 = vst [vmem:[%s207 + $0x34] sm:$0xf] %v3314
        %3347 = vst [vmem:[%s207 + $0x38] sm:$0xf] %v3315
        %3348 = vst [vmem:[%s207 + $0x3c] sm:$0xf] %v3316
        %3349 = vst [vmem:[%s207 + $0x40] sm:$0xf] %v3317
        %3350 = vst [vmem:[%s207 + $0x44] sm:$0xf] %v3318
        %3351 = vst [vmem:[%s207 + $0x48] sm:$0xf] %v3319
        %3352 = vst [vmem:[%s207 + $0x4c] sm:$0xf] %v3320
        %3353 = vst [vmem:[%s207 + $0x50] sm:$0xf] %v3321
        %3354 = vst [vmem:[%s207 + $0x54] sm:$0xf] %v3322
        %3355 = vst [vmem:[%s207 + $0x58] sm:$0xf] %v3323
        %3356 = vst [vmem:[%s207 + $0x5c] sm:$0xf] %v3324
        %3357 = vst [vmem:[%s207 + $0x60] sm:$0xf] %v3325
        %3358 = vst [vmem:[%s207 + $0x64] sm:$0xf] %v3326
        %3359 = vst [vmem:[%s207 + $0x68] sm:$0xf] %v3327
        %3360 = vst [vmem:[%s207 + $0x6c] sm:$0xf] %v3328
        %3361 = vst [vmem:[%s207 + $0x70] sm:$0xf] %v3329
        %3362 = vst [vmem:[%s207 + $0x74] sm:$0xf] %v3330
        %3363 = vst [vmem:[%s207 + $0x78] sm:$0xf] %v3331
        %3364 = vst [vmem:[%s207 + $0x7c] sm:$0xf] %v3332
        %s3365 = sand.u32 %s97, 1
        %s3366 = scalar_lea.sflag [#allocation5], %s3365
        %s3367 = sand.u32 %s97, 1
        %s3368 = smul.addr %s3367, 128
        %s3369 = scalar_lea.vmem [#allocation8], %s3368
        // Predicated region
        $region41: #{tpu_custom_call.1} parent=31 // pred_check
          %p3370 = pneg %p107
        $region42: #{tpu_custom_call.1} parent=31 // pred_check_branch
          %3372 = sbr.rel (%p3370) target = $region44
        $region43: #{tpu_custom_call.1} parent=31 // pred_region
          %3374 = vsyncadd %s3366, 0
          %s3375 = smul.addr %s21, 32
          %s3376 = smul.addr %s3375, 4
          %s3377 = scalar_lea.hbm %s3, %s3376
          %s3378 = sshll.u32 %s3369, 4
          %s3379 = int_to_ptr.vmem [resolvable:$true] %s3378
          %s3380 = sshll.u32 %s3377, 4
          %s3381 = int_to_ptr.hbm [resolvable:$true] %s3380
          %3386 = dma.vmem_to_hbm [thread:$0]  %s3379, 2048, %s3381, %s3366, 64, 64, 4
        $region44: #{tpu_custom_call.1} parent=31 // pred_fallthru
          _
      $region32: #{tpu_custom_call.1} parent=5 // pred_fallthru
        _
      %p3387 = scmp.le.s32.totalorder 2, %s16
      // Predicated region
      $region45: #{tpu_custom_call.1} parent=5 // pred_check
        %p3388 = pneg %p3387
      $region46: #{tpu_custom_call.1} parent=5 // pred_check_branch
        %3390 = sbr.rel (%p3388) target = $region48
      $region47: #{tpu_custom_call.1} parent=5 // pred_region
        %s3391 = ssub.s32 %s16, 2
        // Predicated region
        $region49: #{tpu_custom_call.1} parent=47 // pred_check
          %p3392 = pneg %p113
        $region50: #{tpu_custom_call.1} parent=47 // pred_check_branch
          %3394 = sbr.rel (%p3392) target = $region52
        $region51: #{tpu_custom_call.1} parent=47 // pred_region
          %s3395 = sand.u32 %s98, 1
          %s3396 = scalar_lea.sflag [#allocation5], %s3395
          %s3397 = sand.u32 %s98, 1
          %s3398 = smul.addr %s3397, 128
          %s3399 = scalar_lea.vmem [#allocation8], %s3398
          %3401 = dma.done %s3396, 2048
        $region52: #{tpu_custom_call.1} parent=47 // pred_fallthru
          _
      $region48: #{tpu_custom_call.1} parent=5 // pred_fallthru
        _
    $region6: #{tpu_custom_call.1} parent=1 // loop_footer
      %s20 = sadd.s32 1, %s16
    $region7: #{tpu_custom_call.1} parent=1 // loop_footer_branch
      %15 = sbr.rel target = $region3
    $region8: #{tpu_custom_call.1} parent=1 // loop_exit
      _
    %3402 = vsyncpa [#allocation4], 1
    %s3403 = scalar_lea.sflag [#allocation4], 1
    %3404 = vsyncpa %s3403, 1
    %3405 = vsyncpa [#allocation7], 1
    %3406 = vsyncpa [#allocation5], 1
    %s3407 = scalar_lea.sflag [#allocation5], 1
    %3408 = vsyncpa %s3407, 1

</llo_original>
